<compile_context>
chip_gen: v7x
topology: tpu7x:2x2x1
jax: 0.10.0
libtpu: 0.0.40
codegen_flags: <defaults>
</compile_context>

<pallas_src>
import functools
import numpy as np
import jax
import jax.numpy as jnp
from jax.experimental import pallas as pl
from jax.experimental.pallas import tpu as pltpu

# ----------------------- module / example configuration -----------------------
B = 2          # batch
C_IN = 4       # in_channels
C_OUT = 8      # out_channels
KS = 3         # kernel_size
PAD = 1        # padding
GROUPS = 2     # only affects emb_* parameter shapes (out_channels % groups == 0)
M = 4          # number of value-conv mixtures
H = W = 16     # spatial size


# ------------------------------- Pallas kernel --------------------------------
def _attention_stem_kernel(x_ref, w_ref, mask_ref, out_ref, buf_ref, *,
                           cout, ks, pad, width, padl):
    """Fused AttentionStem forward.

    x_ref:    (C_in, B*H*W)           input; channels on sublanes, batch+space on lanes
    w_ref:    ((2+ks*ks)*cout, C_in)  [Wq ; Wk ; emb-folded per-tap value weights]
    mask_ref: (ks*ks, B*H*W)          1.0 where the tap lands inside its own image
    out_ref:  (cout, B*H*W)
    buf_ref:  ((2+ks*ks)*cout, 2*padl + B*H*W) zero-haloed staging scratch so every
              window tap becomes a static lane-offset slice.
    """
    bn = x_ref.shape[1]
    nw = w_ref.shape[0]
    taps = ks * ks

    # --- all 1x1 convolutions (query, key, ks*ks emb-weighted value convs) in one matmul
    buf_ref[:, padl:padl + bn] = jnp.dot(
        w_ref[...], x_ref[...], preferred_element_type=jnp.float32)
    # zero halo: out-of-array taps read zeros (== bias-free conv of zero padding)
    buf_ref[:, 0:padl] = jnp.zeros((nw, padl), jnp.float32)
    buf_ref[:, padl + bn:padl + bn + padl] = jnp.zeros((nw, padl), jnp.float32)

    q = buf_ref[0:cout, padl:padl + bn]                       # (cout, bn)

    def _tap_offset(t):
        dy, dx = t // ks, t % ks
        return padl + (dy - pad) * width + (dx - pad)         # flattened lane offset

    def _k_shifted(t):
        off = _tap_offset(t)
        return buf_ref[cout:2 * cout, off:off + bn] * mask_ref[t:t + 1, :]

    def _v_shifted(t):
        off = _tap_offset(t)
        c0 = (2 + t) * cout
        return buf_ref[c0:c0 + cout, off:off + bn] * mask_ref[t:t + 1, :]

    # --- pass 1: running max over the ks*ks attention logits (q * k_window) ----
    m_max = q * _k_shifted(0)
    for t in range(1, taps):
        m_max = jnp.maximum(m_max, q * _k_shifted(t))

    # --- pass 2: exp / denominator / weighted value accumulation ---------------
    den = jnp.zeros((cout, bn), jnp.float32)
    acc = jnp.zeros((cout, bn), jnp.float32)
    for t in range(taps):
        p = jnp.exp(q * _k_shifted(t) - m_max)
        den = den + p                       # padded taps contribute exp(0 - max), as in PyTorch
        acc = acc + p * _v_shifted(t)       # padded taps contribute 0 (v is zero there)

    out_ref[...] = acc / den


# ------------------------------ parameter folding ------------------------------
def _fold_positional_mixture(emb_mix, emb_a, emb_b, wv):
    """softmax-over-m positional mixture folded into per-tap 1x1 value weights.

    Exact (linear) rewrite:  sum_m emb[m,dy,dx] * (Wv[m] @ x_pad)
                          == (sum_m emb[m,dy,dx] * Wv[m]) @ x_pad
    """
    hi = jax.lax.Precision.HIGHEST
    m, _ = emb_mix.shape
    ks = emb_a.shape[1]
    cout, cin = wv.shape[1], wv.shape[2]
    la = jnp.dot(emb_mix, emb_a, precision=hi)                 # (m, ks)
    lb = jnp.dot(emb_mix, emb_b, precision=hi)                 # (m, ks)
    emb = (la[:, :, None] + lb[:, None, :]).reshape(m, ks * ks)
    emb = jax.nn.softmax(emb, axis=0)                          # softmax over m
    w_eff = jnp.einsum('mt,moc->toc', emb, wv.reshape(m, cout, cin), precision=hi)
    return w_eff.reshape(ks * ks * cout, cin)                  # (taps*cout, cin)


# ---------------------------------- wrapper ------------------------------------
@jax.jit
def attention_stem_forward(x, wq, wk, wv, emb_a, emb_b, emb_mix):
    b, cin, h, w = x.shape
    m, cout = wv.shape[0], wv.shape[1]
    ks = emb_a.shape[1]
    pad = PAD
    n_img = h * w
    bn = b * n_img
    taps = ks * ks
    nw = (2 + taps) * cout
    # halo sized for the largest flattened tap offset, rounded to a lane tile
    padl = 128 * int(np.ceil(max(1, pad * (w + 1)) / 128.0))

    # parameter-side prep (tiny; exact; folded by XLA)
    w_all = jnp.concatenate(
        [wq.reshape(cout, cin), wk.reshape(cout, cin),
         _fold_positional_mixture(emb_mix, emb_a, emb_b, wv)], axis=0
    ).astype(jnp.float32)                                      # (nw, cin)

    # lane-dense input layout: channels on sublanes, batch*H*W on lanes
    x2 = jnp.transpose(x, (1, 0, 2, 3)).reshape(cin, bn).astype(jnp.float32)

    # per-tap validity masks (shape-only, computed at trace time)
    rows = np.arange(n_img) // w
    cols = np.arange(n_img) % w
    masks = np.zeros((taps, bn), np.float32)
    for t in range(taps):
        oy, ox = t // ks - pad, t % ks - pad
        ok = ((rows + oy >= 0) & (rows + oy < h) &
              (cols + ox >= 0) & (cols + ox < w))
        masks[t] = np.tile(ok.astype(np.float32), b)
    masks = jnp.asarray(masks)

    kernel = functools.partial(_attention_stem_kernel, cout=cout, ks=ks, pad=pad,
                               width=w, padl=padl)
    vmem = pl.BlockSpec(memory_space=pltpu.MemorySpace.VMEM)
    out2 = pl.pallas_call(
        kernel,
        out_shape=jax.ShapeDtypeStruct((cout, bn), jnp.float32),
        in_specs=[vmem, vmem, vmem],
        out_specs=vmem,
        scratch_shapes=[pltpu.VMEM((nw, bn + 2 * padl), jnp.float32)],
    )(x2, w_all, masks)

    # (cout, b*h*w) -> (b, cout, h, w)
    return out2.reshape(cout, b, h, w).transpose(1, 0, 2, 3)


# ------------------- pure-JAX reference (mirrors PyTorch forward) ---------------
def attention_stem_reference(x, wq, wk, wv, emb_a, emb_b, emb_mix):
    b, cin, h, w = x.shape
    m, cout = wv.shape[0], wv.shape[1]
    ks = emb_a.shape[1]
    pad = PAD
    hi = jax.lax.Precision.HIGHEST
    xp = jnp.pad(x, ((0, 0), (0, 0), (pad, pad), (pad, pad)))
    wq2, wk2, wv2 = wq.reshape(cout, cin), wk.reshape(cout, cin), wv.reshape(m, cout, cin)
    q = jnp.einsum('oc,bchw->bohw', wq2, x, precision=hi)
    k = jnp.einsum('oc,bchw->bohw', wk2, xp, precision=hi)
    v = jnp.einsum('moc,bchw->mbohw', wv2, xp, precision=hi)
    k_win = jnp.stack([jnp.stack([k[:, :, dy:dy + h, dx:dx + w]
                                  for dx in range(ks)], axis=-1)
                       for dy in range(ks)], axis=-2)                  # (b,o,h,w,ks,ks)
    v_win = jnp.stack([jnp.stack([v[:, :, :, dy:dy + h, dx:dx + w]
                                  for dx in range(ks)], axis=-1)
                       for dy in range(ks)], axis=-2)                  # (m,b,o,h,w,ks,ks)
    la = jnp.dot(emb_mix, emb_a, precision=hi)
    lb = jnp.dot(emb_mix, emb_b, precision=hi)
    emb = jax.nn.softmax((la[:, :, None] + lb[:, None, :]).reshape(m, -1), axis=0)
    emb = emb.reshape(m, ks, ks)
    v_agg = jnp.einsum('mde,mbohwde->bohwde', emb, v_win, precision=hi)
    logits = q[..., None, None] * k_win
    attn = jax.nn.softmax(logits.reshape(b, cout, h, w, ks * ks), axis=-1)
    out = jnp.sum(attn * v_agg.reshape(b, cout, h, w, ks * ks), axis=-1)
    return out


# ------------------------------------ main --------------------------------------
if __name__ == "__main__":
    key = jax.random.PRNGKey(0)
    kx, k1, k2, k3, k4, k5, k6 = jax.random.split(key, 7)
    x = jax.random.normal(kx, (B, C_IN, H, W), jnp.float32)

    # kaiming-normal-ish 1x1 conv weights (fan_out = C_OUT), N(0,1) embeddings
    std = float(np.sqrt(2.0 / C_OUT))
    wq = std * jax.random.normal(k1, (C_OUT, C_IN, 1, 1), jnp.float32)
    wk = std * jax.random.normal(k2, (C_OUT, C_IN, 1, 1), jnp.float32)
    wv = std * jax.random.normal(k3, (M, C_OUT, C_IN, 1, 1), jnp.float32)
    emb_a = jax.random.normal(k4, (C_OUT // GROUPS, KS), jnp.float32)
    emb_b = jax.random.normal(k5, (C_OUT // GROUPS, KS), jnp.float32)
    emb_mix = jax.random.normal(k6, (M, C_OUT // GROUPS), jnp.float32)

    out = attention_stem_forward(x, wq, wk, wv, emb_a, emb_b, emb_mix)
    out = jax.block_until_ready(out)

    ref = attention_stem_reference(x, wq, wk, wv, emb_a, emb_b, emb_mix)
    err = float(jnp.max(jnp.abs(out - ref)))
    assert out.shape == (B, C_OUT, H, W), out.shape
    assert err < 1e-3, f"max abs error too large: {err}"
    print("KERNEL_OK")
</pallas_src>

<mosaic_0001>
module attributes {stable_mosaic.version = 11 : i64} {
  func.func @_attention_stem_kernel(%arg0: memref<4x512xf32, #tpu.memory_space<vmem>>, %arg1: memref<88x4xf32, #tpu.memory_space<vmem>>, %arg2: memref<9x512xf32, #tpu.memory_space<vmem>>, %arg3: memref<8x512xf32, #tpu.memory_space<vmem>>, %arg4: memref<88x768xf32, #tpu.memory_space<vmem>>) attributes {dimension_semantics = [], scalar_prefetch = 0 : i64, scratch_operands = 1 : i64, tpu.core_type = #tpu.core_type<tc>} {
    %c0 = arith.constant 0 : index
    %c0_0 = arith.constant 0 : index
    %0 = vector.load %arg1[%c0, %c0_0] : memref<88x4xf32, #tpu.memory_space<vmem>>, vector<88x4xf32>
    %c0_1 = arith.constant 0 : index
    %c0_2 = arith.constant 0 : index
    %1 = vector.load %arg0[%c0_1, %c0_2] : memref<4x512xf32, #tpu.memory_space<vmem>>, vector<4x512xf32>
    %cst = arith.constant dense<0.000000e+00> : vector<88x512xf32>
    %2 = tpu.matmul %0, %1, %cst {dimension_numbers = #tpu.dot_dimension_numbers<[1], [0], [0], [1], [0, 0, 1, 1], [], []>} : vector<88x4xf32>, vector<4x512xf32>, vector<88x512xf32> -> vector<88x512xf32>
    %c0_3 = arith.constant 0 : index
    %c128 = arith.constant 128 : index
    %3 = vector.load %arg4[%c0_3, %c128] : memref<88x768xf32, #tpu.memory_space<vmem>>, vector<88x512xf32>
    tpu.vector_store %arg4[%c0_3, %c128], %2 {strides = array<i32>} : memref<88x768xf32, #tpu.memory_space<vmem>>, vector<88x512xf32>,
    %cst_4 = arith.constant 0.000000e+00 : f32
    %4 = vector.broadcast %cst_4 : f32 to vector<88x128xf32>
    %c0_5 = arith.constant 0 : index
    %c0_6 = arith.constant 0 : index
    %5 = vector.load %arg4[%c0_5, %c0_6] : memref<88x768xf32, #tpu.memory_space<vmem>>, vector<88x128xf32>
    tpu.vector_store %arg4[%c0_5, %c0_6], %4 {strides = array<i32>} : memref<88x768xf32, #tpu.memory_space<vmem>>, vector<88x128xf32>,
    %cst_7 = arith.constant 0.000000e+00 : f32
    %6 = vector.broadcast %cst_7 : f32 to vector<88x128xf32>
    %c0_8 = arith.constant 0 : index
    %c640 = arith.constant 640 : index
    %7 = vector.load %arg4[%c0_8, %c640] : memref<88x768xf32, #tpu.memory_space<vmem>>, vector<88x128xf32>
    tpu.vector_store %arg4[%c0_8, %c640], %6 {strides = array<i32>} : memref<88x768xf32, #tpu.memory_space<vmem>>, vector<88x128xf32>,
    %c0_9 = arith.constant 0 : index
    %c128_10 = arith.constant 128 : index
    %8 = vector.load %arg4[%c0_9, %c128_10] : memref<88x768xf32, #tpu.memory_space<vmem>>, vector<8x512xf32>
    %c8 = arith.constant 8 : index
    %c111 = arith.constant 111 : index
    %9 = vector.load %arg4[%c8, %c111] : memref<88x768xf32, #tpu.memory_space<vmem>>, vector<8x512xf32>
    %c0_11 = arith.constant 0 : index
    %c0_12 = arith.constant 0 : index
    %10 = vector.load %arg2[%c0_11, %c0_12] : memref<9x512xf32, #tpu.memory_space<vmem>>, vector<1x512xf32>
    %11 = vector.broadcast %10 : vector<1x512xf32> to vector<8x512xf32>
    %12 = arith.mulf %9, %11 : vector<8x512xf32>
    %13 = arith.mulf %8, %12 : vector<8x512xf32>
    %c8_13 = arith.constant 8 : index
    %c112 = arith.constant 112 : index
    %14 = vector.load %arg4[%c8_13, %c112] : memref<88x768xf32, #tpu.memory_space<vmem>>, vector<8x512xf32>
    %c1 = arith.constant 1 : index
    %c0_14 = arith.constant 0 : index
    %15 = vector.load %arg2[%c1, %c0_14] : memref<9x512xf32, #tpu.memory_space<vmem>>, vector<1x512xf32>
    %16 = vector.broadcast %15 : vector<1x512xf32> to vector<8x512xf32>
    %17 = arith.mulf %14, %16 : vector<8x512xf32>
    %18 = arith.mulf %8, %17 : vector<8x512xf32>
    %19 = arith.maximumf %13, %18 : vector<8x512xf32>
    %c8_15 = arith.constant 8 : index
    %c113 = arith.constant 113 : index
    %20 = vector.load %arg4[%c8_15, %c113] : memref<88x768xf32, #tpu.memory_space<vmem>>, vector<8x512xf32>
    %c2 = arith.constant 2 : index
    %c0_16 = arith.constant 0 : index
    %21 = vector.load %arg2[%c2, %c0_16] : memref<9x512xf32, #tpu.memory_space<vmem>>, vector<1x512xf32>
    %22 = vector.broadcast %21 : vector<1x512xf32> to vector<8x512xf32>
    %23 = arith.mulf %20, %22 : vector<8x512xf32>
    %24 = arith.mulf %8, %23 : vector<8x512xf32>
    %25 = arith.maximumf %19, %24 : vector<8x512xf32>
    %c8_17 = arith.constant 8 : index
    %c127 = arith.constant 127 : index
    %26 = vector.load %arg4[%c8_17, %c127] : memref<88x768xf32, #tpu.memory_space<vmem>>, vector<8x512xf32>
    %c3 = arith.constant 3 : index
    %c0_18 = arith.constant 0 : index
    %27 = vector.load %arg2[%c3, %c0_18] : memref<9x512xf32, #tpu.memory_space<vmem>>, vector<1x512xf32>
    %28 = vector.broadcast %27 : vector<1x512xf32> to vector<8x512xf32>
    %29 = arith.mulf %26, %28 : vector<8x512xf32>
    %30 = arith.mulf %8, %29 : vector<8x512xf32>
    %31 = arith.maximumf %25, %30 : vector<8x512xf32>
    %c8_19 = arith.constant 8 : index
    %c128_20 = arith.constant 128 : index
    %32 = vector.load %arg4[%c8_19, %c128_20] : memref<88x768xf32, #tpu.memory_space<vmem>>, vector<8x512xf32>
    %c4 = arith.constant 4 : index
    %c0_21 = arith.constant 0 : index
    %33 = vector.load %arg2[%c4, %c0_21] : memref<9x512xf32, #tpu.memory_space<vmem>>, vector<1x512xf32>
    %34 = vector.broadcast %33 : vector<1x512xf32> to vector<8x512xf32>
    %35 = arith.mulf %32, %34 : vector<8x512xf32>
    %36 = arith.mulf %8, %35 : vector<8x512xf32>
    %37 = arith.maximumf %31, %36 : vector<8x512xf32>
    %c8_22 = arith.constant 8 : index
    %c129 = arith.constant 129 : index
    %38 = vector.load %arg4[%c8_22, %c129] : memref<88x768xf32, #tpu.memory_space<vmem>>, vector<8x512xf32>
    %c5 = arith.constant 5 : index
    %c0_23 = arith.constant 0 : index
    %39 = vector.load %arg2[%c5, %c0_23] : memref<9x512xf32, #tpu.memory_space<vmem>>, vector<1x512xf32>
    %40 = vector.broadcast %39 : vector<1x512xf32> to vector<8x512xf32>
    %41 = arith.mulf %38, %40 : vector<8x512xf32>
    %42 = arith.mulf %8, %41 : vector<8x512xf32>
    %43 = arith.maximumf %37, %42 : vector<8x512xf32>
    %c8_24 = arith.constant 8 : index
    %c143 = arith.constant 143 : index
    %44 = vector.load %arg4[%c8_24, %c143] : memref<88x768xf32, #tpu.memory_space<vmem>>, vector<8x512xf32>
    %c6 = arith.constant 6 : index
    %c0_25 = arith.constant 0 : index
    %45 = vector.load %arg2[%c6, %c0_25] : memref<9x512xf32, #tpu.memory_space<vmem>>, vector<1x512xf32>
    %46 = vector.broadcast %45 : vector<1x512xf32> to vector<8x512xf32>
    %47 = arith.mulf %44, %46 : vector<8x512xf32>
    %48 = arith.mulf %8, %47 : vector<8x512xf32>
    %49 = arith.maximumf %43, %48 : vector<8x512xf32>
    %c8_26 = arith.constant 8 : index
    %c144 = arith.constant 144 : index
    %50 = vector.load %arg4[%c8_26, %c144] : memref<88x768xf32, #tpu.memory_space<vmem>>, vector<8x512xf32>
    %c7 = arith.constant 7 : index
    %c0_27 = arith.constant 0 : index
    %51 = vector.load %arg2[%c7, %c0_27] : memref<9x512xf32, #tpu.memory_space<vmem>>, vector<1x512xf32>
    %52 = vector.broadcast %51 : vector<1x512xf32> to vector<8x512xf32>
    %53 = arith.mulf %50, %52 : vector<8x512xf32>
    %54 = arith.mulf %8, %53 : vector<8x512xf32>
    %55 = arith.maximumf %49, %54 : vector<8x512xf32>
    %c8_28 = arith.constant 8 : index
    %c145 = arith.constant 145 : index
    %56 = vector.load %arg4[%c8_28, %c145] : memref<88x768xf32, #tpu.memory_space<vmem>>, vector<8x512xf32>
    %c8_29 = arith.constant 8 : index
    %c0_30 = arith.constant 0 : index
    %57 = vector.load %arg2[%c8_29, %c0_30] : memref<9x512xf32, #tpu.memory_space<vmem>>, vector<1x512xf32>
    %58 = vector.broadcast %57 : vector<1x512xf32> to vector<8x512xf32>
    %59 = arith.mulf %56, %58 : vector<8x512xf32>
    %60 = arith.mulf %8, %59 : vector<8x512xf32>
    %61 = arith.maximumf %55, %60 : vector<8x512xf32>
    %cst_31 = arith.constant 0.000000e+00 : f32
    %62 = vector.broadcast %cst_31 : f32 to vector<8x512xf32>
    %cst_32 = arith.constant 0.000000e+00 : f32
    %63 = vector.broadcast %cst_32 : f32 to vector<8x512xf32>
    %c8_33 = arith.constant 8 : index
    %c111_34 = arith.constant 111 : index
    %64 = vector.load %arg4[%c8_33, %c111_34] : memref<88x768xf32, #tpu.memory_space<vmem>>, vector<8x512xf32>
    %c0_35 = arith.constant 0 : index
    %c0_36 = arith.constant 0 : index
    %65 = vector.load %arg2[%c0_35, %c0_36] : memref<9x512xf32, #tpu.memory_space<vmem>>, vector<1x512xf32>
    %66 = vector.broadcast %65 : vector<1x512xf32> to vector<8x512xf32>
    %67 = arith.mulf %64, %66 : vector<8x512xf32>
    %68 = arith.mulf %8, %67 : vector<8x512xf32>
    %69 = arith.subf %68, %61 : vector<8x512xf32>
    %70 = math.exp %69 : vector<8x512xf32>
    %71 = arith.addf %62, %70 : vector<8x512xf32>
    %c16 = arith.constant 16 : index
    %c111_37 = arith.constant 111 : index
    %72 = vector.load %arg4[%c16, %c111_37] : memref<88x768xf32, #tpu.memory_space<vmem>>, vector<8x512xf32>
    %c0_38 = arith.constant 0 : index
    %c0_39 = arith.constant 0 : index
    %73 = vector.load %arg2[%c0_38, %c0_39] : memref<9x512xf32, #tpu.memory_space<vmem>>, vector<1x512xf32>
    %74 = vector.broadcast %73 : vector<1x512xf32> to vector<8x512xf32>
    %75 = arith.mulf %72, %74 : vector<8x512xf32>
    %76 = arith.mulf %70, %75 : vector<8x512xf32>
    %77 = arith.addf %63, %76 : vector<8x512xf32>
    %c8_40 = arith.constant 8 : index
    %c112_41 = arith.constant 112 : index
    %78 = vector.load %arg4[%c8_40, %c112_41] : memref<88x768xf32, #tpu.memory_space<vmem>>, vector<8x512xf32>
    %c1_42 = arith.constant 1 : index
    %c0_43 = arith.constant 0 : index
    %79 = vector.load %arg2[%c1_42, %c0_43] : memref<9x512xf32, #tpu.memory_space<vmem>>, vector<1x512xf32>
    %80 = vector.broadcast %79 : vector<1x512xf32> to vector<8x512xf32>
    %81 = arith.mulf %78, %80 : vector<8x512xf32>
    %82 = arith.mulf %8, %81 : vector<8x512xf32>
    %83 = arith.subf %82, %61 : vector<8x512xf32>
    %84 = math.exp %83 : vector<8x512xf32>
    %85 = arith.addf %71, %84 : vector<8x512xf32>
    %c24 = arith.constant 24 : index
    %c112_44 = arith.constant 112 : index
    %86 = vector.load %arg4[%c24, %c112_44] : memref<88x768xf32, #tpu.memory_space<vmem>>, vector<8x512xf32>
    %c1_45 = arith.constant 1 : index
    %c0_46 = arith.constant 0 : index
    %87 = vector.load %arg2[%c1_45, %c0_46] : memref<9x512xf32, #tpu.memory_space<vmem>>, vector<1x512xf32>
    %88 = vector.broadcast %87 : vector<1x512xf32> to vector<8x512xf32>
    %89 = arith.mulf %86, %88 : vector<8x512xf32>
    %90 = arith.mulf %84, %89 : vector<8x512xf32>
    %91 = arith.addf %77, %90 : vector<8x512xf32>
    %c8_47 = arith.constant 8 : index
    %c113_48 = arith.constant 113 : index
    %92 = vector.load %arg4[%c8_47, %c113_48] : memref<88x768xf32, #tpu.memory_space<vmem>>, vector<8x512xf32>
    %c2_49 = arith.constant 2 : index
    %c0_50 = arith.constant 0 : index
    %93 = vector.load %arg2[%c2_49, %c0_50] : memref<9x512xf32, #tpu.memory_space<vmem>>, vector<1x512xf32>
    %94 = vector.broadcast %93 : vector<1x512xf32> to vector<8x512xf32>
    %95 = arith.mulf %92, %94 : vector<8x512xf32>
    %96 = arith.mulf %8, %95 : vector<8x512xf32>
    %97 = arith.subf %96, %61 : vector<8x512xf32>
    %98 = math.exp %97 : vector<8x512xf32>
    %99 = arith.addf %85, %98 : vector<8x512xf32>
    %c32 = arith.constant 32 : index
    %c113_51 = arith.constant 113 : index
    %100 = vector.load %arg4[%c32, %c113_51] : memref<88x768xf32, #tpu.memory_space<vmem>>, vector<8x512xf32>
    %c2_52 = arith.constant 2 : index
    %c0_53 = arith.constant 0 : index
    %101 = vector.load %arg2[%c2_52, %c0_53] : memref<9x512xf32, #tpu.memory_space<vmem>>, vector<1x512xf32>
    %102 = vector.broadcast %101 : vector<1x512xf32> to vector<8x512xf32>
    %103 = arith.mulf %100, %102 : vector<8x512xf32>
    %104 = arith.mulf %98, %103 : vector<8x512xf32>
    %105 = arith.addf %91, %104 : vector<8x512xf32>
    %c8_54 = arith.constant 8 : index
    %c127_55 = arith.constant 127 : index
    %106 = vector.load %arg4[%c8_54, %c127_55] : memref<88x768xf32, #tpu.memory_space<vmem>>, vector<8x512xf32>
    %c3_56 = arith.constant 3 : index
    %c0_57 = arith.constant 0 : index
    %107 = vector.load %arg2[%c3_56, %c0_57] : memref<9x512xf32, #tpu.memory_space<vmem>>, vector<1x512xf32>
    %108 = vector.broadcast %107 : vector<1x512xf32> to vector<8x512xf32>
    %109 = arith.mulf %106, %108 : vector<8x512xf32>
    %110 = arith.mulf %8, %109 : vector<8x512xf32>
    %111 = arith.subf %110, %61 : vector<8x512xf32>
    %112 = math.exp %111 : vector<8x512xf32>
    %113 = arith.addf %99, %112 : vector<8x512xf32>
    %c40 = arith.constant 40 : index
    %c127_58 = arith.constant 127 : index
    %114 = vector.load %arg4[%c40, %c127_58] : memref<88x768xf32, #tpu.memory_space<vmem>>, vector<8x512xf32>
    %c3_59 = arith.constant 3 : index
    %c0_60 = arith.constant 0 : index
    %115 = vector.load %arg2[%c3_59, %c0_60] : memref<9x512xf32, #tpu.memory_space<vmem>>, vector<1x512xf32>
    %116 = vector.broadcast %115 : vector<1x512xf32> to vector<8x512xf32>
    %117 = arith.mulf %114, %116 : vector<8x512xf32>
    %118 = arith.mulf %112, %117 : vector<8x512xf32>
    %119 = arith.addf %105, %118 : vector<8x512xf32>
    %c8_61 = arith.constant 8 : index
    %c128_62 = arith.constant 128 : index
    %120 = vector.load %arg4[%c8_61, %c128_62] : memref<88x768xf32, #tpu.memory_space<vmem>>, vector<8x512xf32>
    %c4_63 = arith.constant 4 : index
    %c0_64 = arith.constant 0 : index
    %121 = vector.load %arg2[%c4_63, %c0_64] : memref<9x512xf32, #tpu.memory_space<vmem>>, vector<1x512xf32>
    %122 = vector.broadcast %121 : vector<1x512xf32> to vector<8x512xf32>
    %123 = arith.mulf %120, %122 : vector<8x512xf32>
    %124 = arith.mulf %8, %123 : vector<8x512xf32>
    %125 = arith.subf %124, %61 : vector<8x512xf32>
    %126 = math.exp %125 : vector<8x512xf32>
    %127 = arith.addf %113, %126 : vector<8x512xf32>
    %c48 = arith.constant 48 : index
    %c128_65 = arith.constant 128 : index
    %128 = vector.load %arg4[%c48, %c128_65] : memref<88x768xf32, #tpu.memory_space<vmem>>, vector<8x512xf32>
    %c4_66 = arith.constant 4 : index
    %c0_67 = arith.constant 0 : index
    %129 = vector.load %arg2[%c4_66, %c0_67] : memref<9x512xf32, #tpu.memory_space<vmem>>, vector<1x512xf32>
    %130 = vector.broadcast %129 : vector<1x512xf32> to vector<8x512xf32>
    %131 = arith.mulf %128, %130 : vector<8x512xf32>
    %132 = arith.mulf %126, %131 : vector<8x512xf32>
    %133 = arith.addf %119, %132 : vector<8x512xf32>
    %c8_68 = arith.constant 8 : index
    %c129_69 = arith.constant 129 : index
    %134 = vector.load %arg4[%c8_68, %c129_69] : memref<88x768xf32, #tpu.memory_space<vmem>>, vector<8x512xf32>
    %c5_70 = arith.constant 5 : index
    %c0_71 = arith.constant 0 : index
    %135 = vector.load %arg2[%c5_70, %c0_71] : memref<9x512xf32, #tpu.memory_space<vmem>>, vector<1x512xf32>
    %136 = vector.broadcast %135 : vector<1x512xf32> to vector<8x512xf32>
    %137 = arith.mulf %134, %136 : vector<8x512xf32>
    %138 = arith.mulf %8, %137 : vector<8x512xf32>
    %139 = arith.subf %138, %61 : vector<8x512xf32>
    %140 = math.exp %139 : vector<8x512xf32>
    %141 = arith.addf %127, %140 : vector<8x512xf32>
    %c56 = arith.constant 56 : index
    %c129_72 = arith.constant 129 : index
    %142 = vector.load %arg4[%c56, %c129_72] : memref<88x768xf32, #tpu.memory_space<vmem>>, vector<8x512xf32>
    %c5_73 = arith.constant 5 : index
    %c0_74 = arith.constant 0 : index
    %143 = vector.load %arg2[%c5_73, %c0_74] : memref<9x512xf32, #tpu.memory_space<vmem>>, vector<1x512xf32>
    %144 = vector.broadcast %143 : vector<1x512xf32> to vector<8x512xf32>
    %145 = arith.mulf %142, %144 : vector<8x512xf32>
    %146 = arith.mulf %140, %145 : vector<8x512xf32>
    %147 = arith.addf %133, %146 : vector<8x512xf32>
    %c8_75 = arith.constant 8 : index
    %c143_76 = arith.constant 143 : index
    %148 = vector.load %arg4[%c8_75, %c143_76] : memref<88x768xf32, #tpu.memory_space<vmem>>, vector<8x512xf32>
    %c6_77 = arith.constant 6 : index
    %c0_78 = arith.constant 0 : index
    %149 = vector.load %arg2[%c6_77, %c0_78] : memref<9x512xf32, #tpu.memory_space<vmem>>, vector<1x512xf32>
    %150 = vector.broadcast %149 : vector<1x512xf32> to vector<8x512xf32>
    %151 = arith.mulf %148, %150 : vector<8x512xf32>
    %152 = arith.mulf %8, %151 : vector<8x512xf32>
    %153 = arith.subf %152, %61 : vector<8x512xf32>
    %154 = math.exp %153 : vector<8x512xf32>
    %155 = arith.addf %141, %154 : vector<8x512xf32>
    %c64 = arith.constant 64 : index
    %c143_79 = arith.constant 143 : index
    %156 = vector.load %arg4[%c64, %c143_79] : memref<88x768xf32, #tpu.memory_space<vmem>>, vector<8x512xf32>
    %c6_80 = arith.constant 6 : index
    %c0_81 = arith.constant 0 : index
    %157 = vector.load %arg2[%c6_80, %c0_81] : memref<9x512xf32, #tpu.memory_space<vmem>>, vector<1x512xf32>
    %158 = vector.broadcast %157 : vector<1x512xf32> to vector<8x512xf32>
    %159 = arith.mulf %156, %158 : vector<8x512xf32>
    %160 = arith.mulf %154, %159 : vector<8x512xf32>
    %161 = arith.addf %147, %160 : vector<8x512xf32>
    %c8_82 = arith.constant 8 : index
    %c144_83 = arith.constant 144 : index
    %162 = vector.load %arg4[%c8_82, %c144_83] : memref<88x768xf32, #tpu.memory_space<vmem>>, vector<8x512xf32>
    %c7_84 = arith.constant 7 : index
    %c0_85 = arith.constant 0 : index
    %163 = vector.load %arg2[%c7_84, %c0_85] : memref<9x512xf32, #tpu.memory_space<vmem>>, vector<1x512xf32>
    %164 = vector.broadcast %163 : vector<1x512xf32> to vector<8x512xf32>
    %165 = arith.mulf %162, %164 : vector<8x512xf32>
    %166 = arith.mulf %8, %165 : vector<8x512xf32>
    %167 = arith.subf %166, %61 : vector<8x512xf32>
    %168 = math.exp %167 : vector<8x512xf32>
    %169 = arith.addf %155, %168 : vector<8x512xf32>
    %c72 = arith.constant 72 : index
    %c144_86 = arith.constant 144 : index
    %170 = vector.load %arg4[%c72, %c144_86] : memref<88x768xf32, #tpu.memory_space<vmem>>, vector<8x512xf32>
    %c7_87 = arith.constant 7 : index
    %c0_88 = arith.constant 0 : index
    %171 = vector.load %arg2[%c7_87, %c0_88] : memref<9x512xf32, #tpu.memory_space<vmem>>, vector<1x512xf32>
    %172 = vector.broadcast %171 : vector<1x512xf32> to vector<8x512xf32>
    %173 = arith.mulf %170, %172 : vector<8x512xf32>
    %174 = arith.mulf %168, %173 : vector<8x512xf32>
    %175 = arith.addf %161, %174 : vector<8x512xf32>
    %c8_89 = arith.constant 8 : index
    %c145_90 = arith.constant 145 : index
    %176 = vector.load %arg4[%c8_89, %c145_90] : memref<88x768xf32, #tpu.memory_space<vmem>>, vector<8x512xf32>
    %c8_91 = arith.constant 8 : index
    %c0_92 = arith.constant 0 : index
    %177 = vector.load %arg2[%c8_91, %c0_92] : memref<9x512xf32, #tpu.memory_space<vmem>>, vector<1x512xf32>
    %178 = vector.broadcast %177 : vector<1x512xf32> to vector<8x512xf32>
    %179 = arith.mulf %176, %178 : vector<8x512xf32>
    %180 = arith.mulf %8, %179 : vector<8x512xf32>
    %181 = arith.subf %180, %61 : vector<8x512xf32>
    %182 = math.exp %181 : vector<8x512xf32>
    %183 = arith.addf %169, %182 : vector<8x512xf32>
    %c80 = arith.constant 80 : index
    %c145_93 = arith.constant 145 : index
    %184 = vector.load %arg4[%c80, %c145_93] : memref<88x768xf32, #tpu.memory_space<vmem>>, vector<8x512xf32>
    %c8_94 = arith.constant 8 : index
    %c0_95 = arith.constant 0 : index
    %185 = vector.load %arg2[%c8_94, %c0_95] : memref<9x512xf32, #tpu.memory_space<vmem>>, vector<1x512xf32>
    %186 = vector.broadcast %185 : vector<1x512xf32> to vector<8x512xf32>
    %187 = arith.mulf %184, %186 : vector<8x512xf32>
    %188 = arith.mulf %182, %187 : vector<8x512xf32>
    %189 = arith.addf %175, %188 : vector<8x512xf32>
    %190 = arith.divf %189, %183 : vector<8x512xf32>
    %c0_96 = arith.constant 0 : index
    %c0_97 = arith.constant 0 : index
    %191 = vector.load %arg3[%c0_96, %c0_97] : memref<8x512xf32, #tpu.memory_space<vmem>>, vector<8x512xf32>
    tpu.vector_store %arg3[%c0_96, %c0_97], %190 {strides = array<i32>} : memref<8x512xf32, #tpu.memory_space<vmem>>, vector<8x512xf32>,
    return
  }
}

</mosaic_0001>

<llo_original>
// kernel: attention_stem_forward.1
$region0: #{attention_stem_forward.1}
  #allocation0 [shape = 'u32[]', space=smem, size = 0x4, offset = 0x4, fixed_abs, tag = 'smem constant byte address 0x4 - core index']
  #allocation1 [shape = 'u32[144,128]{1,0:T(1,128)}', space=vmem, size = 0x12000, scoped, tag = 'internal scratch']
  #allocation2 [shape = 'f32[88,768]{1,0:T(8,128)}', space=vmem, size = 0x42000, scoped, tag = 'scratch operand']
  %s0 = inlined_call_operand.vmem [shape: f32[4,512], index: 0, kind: input, shape index: {}]
  %s1 = inlined_call_operand.vmem [shape: f32[88,4], index: 1, kind: input, shape index: {}]
  %s2 = inlined_call_operand.vmem [shape: f32[9,512], index: 2, kind: input, shape index: {}]
  %s3 = inlined_call_operand.vmem [shape: f32[8,512], index: 3, kind: output, shape index: {}]
  %s4 = sld [smem:[#allocation0]]
  $region22: #{attention_stem_forward.1} parent=0
    _
  %s6 = ssub.s32 1, %s4
  %s7 = scalar_select 0, %s6, %s4
  // Predicated region
  $region2: #{attention_stem_forward.1} parent=0 // pred_check
    _
  $region3: #{attention_stem_forward.1} parent=0 // pred_check_branch
    %9 = sbr.rel (0) target = $region5
  $region4: #{attention_stem_forward.1} parent=0 // pred_region
    _
  $region5: #{attention_stem_forward.1} parent=0 // pred_fallthru
    _
  // Predicated region
  $region6: #{attention_stem_forward.1} parent=0 // pred_check
    _
  $region7: #{attention_stem_forward.1} parent=0 // pred_check_branch
    %11 = sbr.rel (0) target = $region9
  $region8: #{attention_stem_forward.1} parent=0 // pred_region
    _
  $region9: #{attention_stem_forward.1} parent=0 // pred_fallthru
    _
  // Predicated region
  $region10: #{attention_stem_forward.1} parent=0 // pred_check
    _
  $region11: #{attention_stem_forward.1} parent=0 // pred_check_branch
    %13 = sbr.rel (0) target = $region13
  $region12: #{attention_stem_forward.1} parent=0 // pred_region
    _
  $region13: #{attention_stem_forward.1} parent=0 // pred_fallthru
    _
  %v14 = vld [vmem:[%s1] sm:$0xff]
  %v15 = vld [vmem:[%s1 + $0x8] sm:$0xff]
  %v16 = vld [vmem:[%s1 + $0x10] sm:$0xff]
  %v17 = vld [vmem:[%s1 + $0x18] sm:$0xff]
  %v18 = vld [vmem:[%s1 + $0x20] sm:$0xff]
  %v19 = vld [vmem:[%s1 + $0x28] sm:$0xff]
  %v20 = vld [vmem:[%s1 + $0x30] sm:$0xff]
  %v21 = vld [vmem:[%s1 + $0x38] sm:$0xff]
  %v22 = vld [vmem:[%s1 + $0x40] sm:$0xff]
  %v23 = vld [vmem:[%s1 + $0x48] sm:$0xff]
  %v24 = vld [vmem:[%s1 + $0x50] sm:$0xff]
  %v25 = vld [vmem:[%s0] sm:$0xff]
  %v26 = vld [vmem:[%s0 + $0x8] sm:$0xff]
  %v29 = vcombine.high %v25, %v25
  %v30 = vcombine.high %v26, %v26
  %vm31 = vcmask 31744
  %v33 = vsel %vm31, %v14, 0
  %v36 = vsel %vm31, %v15, 0
  %v39 = vsel %vm31, %v16, 0
  %v42 = vsel %vm31, %v17, 0
  %v45 = vsel %vm31, %v18, 0
  %v48 = vsel %vm31, %v19, 0
  %v51 = vsel %vm31, %v20, 0
  %v54 = vsel %vm31, %v21, 0
  %v57 = vsel %vm31, %v22, 0
  %v60 = vsel %vm31, %v23, 0
  %v63 = vsel %vm31, %v24, 0
  %vm65 = vcmask 1043456
  %v66 = vsel %vm65, %v25, 0
  %v68 = vsel %vm65, %v29, 0
  %v70 = vsel %vm65, %v26, 0
  %v72 = vsel %vm65, %v30, 0
  %74 = vmatprep.subr.mxu0 %v68
  %75 = vmatpush1.msra.mxu0 %v66
  %76 = vmatprep.subr.mxu0 0.0
  %77 = vmatpush1.msra.mxu0 0.0
  %78 = vmatprep.subr.mxu0 0.0
  %79 = vmatpush1.msra.mxu0 0.0
  %80 = vmatprep.subr.mxu0 0.0
  %81 = vmatpush1.msra.mxu0 0.0
  %82 = vmatprep.subr.mxu0 0.0
  %83 = vmatpush1.msra.mxu0 0.0
  %84 = vmatprep.subr.mxu0 0.0
  %85 = vmatpush1.msra.mxu0 0.0
  %86 = vmatprep.subr.mxu0 0.0
  %87 = vmatpush1.msra.mxu0 0.0
  %88 = vmatprep.subr.mxu0 0.0
  %89 = vmatpush1.msra.mxu0 0.0
  %90 = vmatprep.subr.mxu0 0.0
  %91 = vmatpush1.msra.mxu0 0.0
  %92 = vmatprep.subr.mxu0 0.0
  %93 = vmatpush1.msra.mxu0 0.0
  %94 = vmatprep.subr.mxu0 0.0
  %95 = vmatpush1.msra.mxu0 0.0
  %96 = vmatprep.subr.mxu0 0.0
  %97 = vmatpush1.msra.mxu0 0.0
  %98 = vmatprep.subr.mxu0 0.0
  %99 = vmatpush1.msra.mxu0 0.0
  %100 = vmatprep.subr.mxu0 0.0
  %101 = vmatpush1.msra.mxu0 0.0
  %102 = vmatprep.subr.mxu0 0.0
  %103 = vmatpush1.msra.mxu0 0.0
  %104 = vmatprep.subr.mxu0 0.0
  %105 = vmatpush1.msra.mxu0 0.0
  %106 = vmatprep.subr.mxu0 0.0
  %107 = vmatpush1.msra.mxu0 0.0
  %108 = vmatprep.subr.mxu0 0.0
  %109 = vmatpush1.msra.mxu0 0.0
  %110 = vmatprep.subr.mxu0 0.0
  %111 = vmatpush1.msra.mxu0 0.0
  %112 = vmatprep.subr.mxu0 0.0
  %113 = vmatpush1.msra.mxu0 0.0
  %114 = vmatprep.subr.mxu0 0.0
  %115 = vmatpush1.msra.mxu0 0.0
  %116 = vmatprep.subr.mxu0 0.0
  %117 = vmatpush1.msra.mxu0 0.0
  %118 = vmatprep.subr.mxu0 0.0
  %119 = vmatpush1.msra.mxu0 0.0
  %120 = vmatprep.subr.mxu0 0.0
  %121 = vmatpush1.msra.mxu0 0.0
  %122 = vmatprep.subr.mxu0 0.0
  %123 = vmatpush1.msra.mxu0 0.0
  %124 = vmatprep.subr.mxu0 0.0
  %125 = vmatpush1.msra.mxu0 0.0
  %126 = vmatprep.subr.mxu0 0.0
  %127 = vmatpush1.msra.mxu0 0.0
  %128 = vmatprep.subr.mxu0 0.0
  %129 = vmatpush1.msra.mxu0 0.0
  %130 = vmatprep.subr.mxu0 0.0
  %131 = vmatpush1.msra.mxu0 0.0
  %132 = vmatprep.subr.mxu0 0.0
  %133 = vmatpush1.msra.mxu0 0.0
  %134 = vmatprep.subr.mxu0 0.0
  %135 = vmatpush1.msra.mxu0 0.0
  %136 = vmatprep.subr.mxu0 0.0
  %137 = vmatpush1.msra.mxu0 0.0
  %138 = vmatprep.mubr.f32.mxu0 0.0
  %139 = vmatmul.mubr.f32.gmra.mrb[0].mxu0 %v33
  %v140 = vpop.f32.mrb[0].mxu0
  %v141 = vadd.f32 0.0, %v140
  %v142 = vpop.f32.mrb[0].mxu0
  %v143 = vadd.f32 0.0, %v142
  %144 = vmatprep.mubr.f32.mxu0 0.0
  %145 = vmatmul.mubr.f32.gmra.mrb[0].mxu0 %v36
  %v146 = vpop.f32.mrb[0].mxu0
  %v147 = vadd.f32 0.0, %v146
  %v148 = vpop.f32.mrb[0].mxu0
  %v149 = vadd.f32 0.0, %v148
  %150 = vmatprep.mubr.f32.mxu0 0.0
  %151 = vmatmul.mubr.f32.gmra.mrb[0].mxu0 %v39
  %v152 = vpop.f32.mrb[0].mxu0
  %v153 = vadd.f32 0.0, %v152
  %v154 = vpop.f32.mrb[0].mxu0
  %v155 = vadd.f32 0.0, %v154
  %156 = vmatprep.mubr.f32.mxu0 0.0
  %157 = vmatmul.mubr.f32.gmra.mrb[0].mxu0 %v42
  %v158 = vpop.f32.mrb[0].mxu0
  %v159 = vadd.f32 0.0, %v158
  %v160 = vpop.f32.mrb[0].mxu0
  %v161 = vadd.f32 0.0, %v160
  %162 = vmatprep.mubr.f32.mxu0 0.0
  %163 = vmatmul.mubr.f32.gmra.mrb[0].mxu0 %v45
  %v164 = vpop.f32.mrb[0].mxu0
  %v165 = vadd.f32 0.0, %v164
  %v166 = vpop.f32.mrb[0].mxu0
  %v167 = vadd.f32 0.0, %v166
  %168 = vmatprep.mubr.f32.mxu0 0.0
  %169 = vmatmul.mubr.f32.gmra.mrb[0].mxu0 %v48
  %v170 = vpop.f32.mrb[0].mxu0
  %v171 = vadd.f32 0.0, %v170
  %v172 = vpop.f32.mrb[0].mxu0
  %v173 = vadd.f32 0.0, %v172
  %174 = vmatprep.mubr.f32.mxu0 0.0
  %175 = vmatmul.mubr.f32.gmra.mrb[0].mxu0 %v51
  %v176 = vpop.f32.mrb[0].mxu0
  %v177 = vadd.f32 0.0, %v176
  %v178 = vpop.f32.mrb[0].mxu0
  %v179 = vadd.f32 0.0, %v178
  %180 = vmatprep.mubr.f32.mxu0 0.0
  %181 = vmatmul.mubr.f32.gmra.mrb[0].mxu0 %v54
  %v182 = vpop.f32.mrb[0].mxu0
  %v183 = vadd.f32 0.0, %v182
  %v184 = vpop.f32.mrb[0].mxu0
  %v185 = vadd.f32 0.0, %v184
  %186 = vmatprep.mubr.f32.mxu0 0.0
  %187 = vmatmul.mubr.f32.gmra.mrb[0].mxu0 %v57
  %v188 = vpop.f32.mrb[0].mxu0
  %v189 = vadd.f32 0.0, %v188
  %v190 = vpop.f32.mrb[0].mxu0
  %v191 = vadd.f32 0.0, %v190
  %192 = vmatprep.mubr.f32.mxu0 0.0
  %193 = vmatmul.mubr.f32.gmra.mrb[0].mxu0 %v60
  %v194 = vpop.f32.mrb[0].mxu0
  %v195 = vadd.f32 0.0, %v194
  %v196 = vpop.f32.mrb[0].mxu0
  %v197 = vadd.f32 0.0, %v196
  %198 = vmatprep.mubr.f32.mxu0 0.0
  %199 = vmatmul.mubr.f32.gmra.mrb[0].mxu0 %v63
  %v200 = vpop.f32.mrb[0].mxu0
  %v201 = vadd.f32 0.0, %v200
  %v202 = vpop.f32.mrb[0].mxu0
  %v203 = vadd.f32 0.0, %v202
  %204 = vdwg.mxu0
  %205 = vmatprep.subr.mxu0 %v72
  %206 = vmatpush1.msra.mxu0 %v70
  %207 = vmatprep.subr.mxu0 0.0
  %208 = vmatpush1.msra.mxu0 0.0
  %209 = vmatprep.subr.mxu0 0.0
  %210 = vmatpush1.msra.mxu0 0.0
  %211 = vmatprep.subr.mxu0 0.0
  %212 = vmatpush1.msra.mxu0 0.0
  %213 = vmatprep.subr.mxu0 0.0
  %214 = vmatpush1.msra.mxu0 0.0
  %215 = vmatprep.subr.mxu0 0.0
  %216 = vmatpush1.msra.mxu0 0.0
  %217 = vmatprep.subr.mxu0 0.0
  %218 = vmatpush1.msra.mxu0 0.0
  %219 = vmatprep.subr.mxu0 0.0
  %220 = vmatpush1.msra.mxu0 0.0
  %221 = vmatprep.subr.mxu0 0.0
  %222 = vmatpush1.msra.mxu0 0.0
  %223 = vmatprep.subr.mxu0 0.0
  %224 = vmatpush1.msra.mxu0 0.0
  %225 = vmatprep.subr.mxu0 0.0
  %226 = vmatpush1.msra.mxu0 0.0
  %227 = vmatprep.subr.mxu0 0.0
  %228 = vmatpush1.msra.mxu0 0.0
  %229 = vmatprep.subr.mxu0 0.0
  %230 = vmatpush1.msra.mxu0 0.0
  %231 = vmatprep.subr.mxu0 0.0
  %232 = vmatpush1.msra.mxu0 0.0
  %233 = vmatprep.subr.mxu0 0.0
  %234 = vmatpush1.msra.mxu0 0.0
  %235 = vmatprep.subr.mxu0 0.0
  %236 = vmatpush1.msra.mxu0 0.0
  %237 = vmatprep.subr.mxu0 0.0
  %238 = vmatpush1.msra.mxu0 0.0
  %239 = vmatprep.subr.mxu0 0.0
  %240 = vmatpush1.msra.mxu0 0.0
  %241 = vmatprep.subr.mxu0 0.0
  %242 = vmatpush1.msra.mxu0 0.0
  %243 = vmatprep.subr.mxu0 0.0
  %244 = vmatpush1.msra.mxu0 0.0
  %245 = vmatprep.subr.mxu0 0.0
  %246 = vmatpush1.msra.mxu0 0.0
  %247 = vmatprep.subr.mxu0 0.0
  %248 = vmatpush1.msra.mxu0 0.0
  %249 = vmatprep.subr.mxu0 0.0
  %250 = vmatpush1.msra.mxu0 0.0
  %251 = vmatprep.subr.mxu0 0.0
  %252 = vmatpush1.msra.mxu0 0.0
  %253 = vmatprep.subr.mxu0 0.0
  %254 = vmatpush1.msra.mxu0 0.0
  %255 = vmatprep.subr.mxu0 0.0
  %256 = vmatpush1.msra.mxu0 0.0
  %257 = vmatprep.subr.mxu0 0.0
  %258 = vmatpush1.msra.mxu0 0.0
  %259 = vmatprep.subr.mxu0 0.0
  %260 = vmatpush1.msra.mxu0 0.0
  %261 = vmatprep.subr.mxu0 0.0
  %262 = vmatpush1.msra.mxu0 0.0
  %263 = vmatprep.subr.mxu0 0.0
  %264 = vmatpush1.msra.mxu0 0.0
  %265 = vmatprep.subr.mxu0 0.0
  %266 = vmatpush1.msra.mxu0 0.0
  %267 = vmatprep.subr.mxu0 0.0
  %268 = vmatpush1.msra.mxu0 0.0
  %269 = vmatprep.mubr.f32.mxu0 0.0
  %270 = vmatmul.mubr.f32.gmra.mrb[0].mxu0 %v33
  %v271 = vpop.f32.mrb[0].mxu0
  %v272 = vadd.f32 0.0, %v271
  %v273 = vpop.f32.mrb[0].mxu0
  %v274 = vadd.f32 0.0, %v273
  %275 = vmatprep.mubr.f32.mxu0 0.0
  %276 = vmatmul.mubr.f32.gmra.mrb[0].mxu0 %v36
  %v277 = vpop.f32.mrb[0].mxu0
  %v278 = vadd.f32 0.0, %v277
  %v279 = vpop.f32.mrb[0].mxu0
  %v280 = vadd.f32 0.0, %v279
  %281 = vmatprep.mubr.f32.mxu0 0.0
  %282 = vmatmul.mubr.f32.gmra.mrb[0].mxu0 %v39
  %v283 = vpop.f32.mrb[0].mxu0
  %v284 = vadd.f32 0.0, %v283
  %v285 = vpop.f32.mrb[0].mxu0
  %v286 = vadd.f32 0.0, %v285
  %287 = vmatprep.mubr.f32.mxu0 0.0
  %288 = vmatmul.mubr.f32.gmra.mrb[0].mxu0 %v42
  %v289 = vpop.f32.mrb[0].mxu0
  %v290 = vadd.f32 0.0, %v289
  %v291 = vpop.f32.mrb[0].mxu0
  %v292 = vadd.f32 0.0, %v291
  %293 = vmatprep.mubr.f32.mxu0 0.0
  %294 = vmatmul.mubr.f32.gmra.mrb[0].mxu0 %v45
  %v295 = vpop.f32.mrb[0].mxu0
  %v296 = vadd.f32 0.0, %v295
  %v297 = vpop.f32.mrb[0].mxu0
  %v298 = vadd.f32 0.0, %v297
  %299 = vmatprep.mubr.f32.mxu0 0.0
  %300 = vmatmul.mubr.f32.gmra.mrb[0].mxu0 %v48
  %v301 = vpop.f32.mrb[0].mxu0
  %v302 = vadd.f32 0.0, %v301
  %v303 = vpop.f32.mrb[0].mxu0
  %v304 = vadd.f32 0.0, %v303
  %305 = vmatprep.mubr.f32.mxu0 0.0
  %306 = vmatmul.mubr.f32.gmra.mrb[0].mxu0 %v51
  %v307 = vpop.f32.mrb[0].mxu0
  %v308 = vadd.f32 0.0, %v307
  %v309 = vpop.f32.mrb[0].mxu0
  %v310 = vadd.f32 0.0, %v309
  %311 = vmatprep.mubr.f32.mxu0 0.0
  %312 = vmatmul.mubr.f32.gmra.mrb[0].mxu0 %v54
  %v313 = vpop.f32.mrb[0].mxu0
  %v314 = vadd.f32 0.0, %v313
  %v315 = vpop.f32.mrb[0].mxu0
  %v316 = vadd.f32 0.0, %v315
  %317 = vmatprep.mubr.f32.mxu0 0.0
  %318 = vmatmul.mubr.f32.gmra.mrb[0].mxu0 %v57
  %v319 = vpop.f32.mrb[0].mxu0
  %v320 = vadd.f32 0.0, %v319
  %v321 = vpop.f32.mrb[0].mxu0
  %v322 = vadd.f32 0.0, %v321
  %323 = vmatprep.mubr.f32.mxu0 0.0
  %324 = vmatmul.mubr.f32.gmra.mrb[0].mxu0 %v60
  %v325 = vpop.f32.mrb[0].mxu0
  %v326 = vadd.f32 0.0, %v325
  %v327 = vpop.f32.mrb[0].mxu0
  %v328 = vadd.f32 0.0, %v327
  %329 = vmatprep.mubr.f32.mxu0 0.0
  %330 = vmatmul.mubr.f32.gmra.mrb[0].mxu0 %v63
  %v331 = vpop.f32.mrb[0].mxu0
  %v332 = vadd.f32 0.0, %v331
  %v333 = vpop.f32.mrb[0].mxu0
  %v334 = vadd.f32 0.0, %v333
  %335 = vdwg.mxu0
  %336 = vst [vmem:[#allocation2 + $0x8] sm:$0xff] %v141
  %337 = vst [vmem:[#allocation2 + $0x10] sm:$0xff] %v143
  %338 = vst [vmem:[#allocation2 + $0x18] sm:$0xff] %v272
  %339 = vst [vmem:[#allocation2 + $0x20] sm:$0xff] %v274
  %340 = vst [vmem:[#allocation2 + $0x38] sm:$0xff] %v147
  %341 = vst [vmem:[#allocation2 + $0x40] sm:$0xff] %v149
  %342 = vst [vmem:[#allocation2 + $0x48] sm:$0xff] %v278
  %343 = vst [vmem:[#allocation2 + $0x50] sm:$0xff] %v280
  %344 = vst [vmem:[#allocation2 + $0x68] sm:$0xff] %v153
  %345 = vst [vmem:[#allocation2 + $0x70] sm:$0xff] %v155
  %346 = vst [vmem:[#allocation2 + $0x78] sm:$0xff] %v284
  %347 = vst [vmem:[#allocation2 + $0x80] sm:$0xff] %v286
  %348 = vst [vmem:[#allocation2 + $0x98] sm:$0xff] %v159
  %349 = vst [vmem:[#allocation2 + $0xa0] sm:$0xff] %v161
  %350 = vst [vmem:[#allocation2 + $0xa8] sm:$0xff] %v290
  %351 = vst [vmem:[#allocation2 + $0xb0] sm:$0xff] %v292
  %352 = vst [vmem:[#allocation2 + $0xc8] sm:$0xff] %v165
  %353 = vst [vmem:[#allocation2 + $0xd0] sm:$0xff] %v167
  %354 = vst [vmem:[#allocation2 + $0xd8] sm:$0xff] %v296
  %355 = vst [vmem:[#allocation2 + $0xe0] sm:$0xff] %v298
  %356 = vst [vmem:[#allocation2 + $0xf8] sm:$0xff] %v171
  %357 = vst [vmem:[#allocation2 + $0x100] sm:$0xff] %v173
  %358 = vst [vmem:[#allocation2 + $0x108] sm:$0xff] %v302
  %359 = vst [vmem:[#allocation2 + $0x110] sm:$0xff] %v304
  %360 = vst [vmem:[#allocation2 + $0x128] sm:$0xff] %v177
  %361 = vst [vmem:[#allocation2 + $0x130] sm:$0xff] %v179
  %362 = vst [vmem:[#allocation2 + $0x138] sm:$0xff] %v308
  %363 = vst [vmem:[#allocation2 + $0x140] sm:$0xff] %v310
  %364 = vst [vmem:[#allocation2 + $0x158] sm:$0xff] %v183
  %365 = vst [vmem:[#allocation2 + $0x160] sm:$0xff] %v185
  %366 = vst [vmem:[#allocation2 + $0x168] sm:$0xff] %v314
  %367 = vst [vmem:[#allocation2 + $0x170] sm:$0xff] %v316
  %368 = vst [vmem:[#allocation2 + $0x188] sm:$0xff] %v189
  %369 = vst [vmem:[#allocation2 + $0x190] sm:$0xff] %v191
  %370 = vst [vmem:[#allocation2 + $0x198] sm:$0xff] %v320
  %371 = vst [vmem:[#allocation2 + $0x1a0] sm:$0xff] %v322
  %372 = vst [vmem:[#allocation2 + $0x1b8] sm:$0xff] %v195
  %373 = vst [vmem:[#allocation2 + $0x1c0] sm:$0xff] %v197
  %374 = vst [vmem:[#allocation2 + $0x1c8] sm:$0xff] %v326
  %375 = vst [vmem:[#allocation2 + $0x1d0] sm:$0xff] %v328
  %376 = vst [vmem:[#allocation2 + $0x1e8] sm:$0xff] %v201
  %377 = vst [vmem:[#allocation2 + $0x1f0] sm:$0xff] %v203
  %378 = vst [vmem:[#allocation2 + $0x1f8] sm:$0xff] %v332
  %379 = vst [vmem:[#allocation2 + $0x200] sm:$0xff] %v334
  %380 = vst [vmem:[#allocation2] sm:$0xff] 0.0
  %381 = vst [vmem:[#allocation2 + $0x30] sm:$0xff] 0.0
  %382 = vst [vmem:[#allocation2 + $0x60] sm:$0xff] 0.0
  %383 = vst [vmem:[#allocation2 + $0x90] sm:$0xff] 0.0
  %384 = vst [vmem:[#allocation2 + $0xc0] sm:$0xff] 0.0
  %385 = vst [vmem:[#allocation2 + $0xf0] sm:$0xff] 0.0
  %386 = vst [vmem:[#allocation2 + $0x120] sm:$0xff] 0.0
  %387 = vst [vmem:[#allocation2 + $0x150] sm:$0xff] 0.0
  %388 = vst [vmem:[#allocation2 + $0x180] sm:$0xff] 0.0
  %389 = vst [vmem:[#allocation2 + $0x1b0] sm:$0xff] 0.0
  %390 = vst [vmem:[#allocation2 + $0x1e0] sm:$0xff] 0.0
  %391 = vst [vmem:[#allocation2 + $0x28] sm:$0xff] 0.0
  %392 = vst [vmem:[#allocation2 + $0x58] sm:$0xff] 0.0
  %393 = vst [vmem:[#allocation2 + $0x88] sm:$0xff] 0.0
  %394 = vst [vmem:[#allocation2 + $0xb8] sm:$0xff] 0.0
  %395 = vst [vmem:[#allocation2 + $0xe8] sm:$0xff] 0.0
  %396 = vst [vmem:[#allocation2 + $0x118] sm:$0xff] 0.0
  %397 = vst [vmem:[#allocation2 + $0x148] sm:$0xff] 0.0
  %398 = vst [vmem:[#allocation2 + $0x178] sm:$0xff] 0.0
  %399 = vst [vmem:[#allocation2 + $0x1a8] sm:$0xff] 0.0
  %400 = vst [vmem:[#allocation2 + $0x1d8] sm:$0xff] 0.0
  %401 = vst [vmem:[#allocation2 + $0x208] sm:$0xff] 0.0
  %v402 = vld [vmem:[#allocation2 + $0x8] sm:$0xff]
  %v403 = vld [vmem:[#allocation2 + $0x10] sm:$0xff]
  %v404 = vld [vmem:[#allocation2 + $0x18] sm:$0xff]
  %v405 = vld [vmem:[#allocation2 + $0x20] sm:$0xff]
  %v406 = vld [vmem:[#allocation2 + $0x30] sm:$0xff]
  %v407 = vld [vmem:[#allocation2 + $0x38] sm:$0xff]
  %v408 = vld [vmem:[#allocation2 + $0x40] sm:$0xff]
  %v409 = vld [vmem:[#allocation2 + $0x48] sm:$0xff]
  %v410 = vld [vmem:[#allocation2 + $0x50] sm:$0xff]
  %v411 = vld [vmem:[%s2] ss:$8 sm:$0xf]
  %v413 = vlaneseq
  %v414 = vshrl.u32 %v413, 7
  %v415 = vsub.s32 0, %v414
  %v416 = vrot.slane %v411, %v415
  %v417 = vlaneseq
  %v418 = vshrl.u32 %v417, 7
  %v419 = vsub.s32 1, %v418
  %v420 = vrot.slane %v411, %v419
  %v421 = vlaneseq
  %v422 = vshrl.u32 %v421, 7
  %v423 = vsub.s32 2, %v422
  %v424 = vrot.slane %v411, %v423
  %v425 = vlaneseq
  %v426 = vshrl.u32 %v425, 7
  %v427 = vsub.s32 3, %v426
  %v428 = vrot.slane %v411, %v427
  %429 = vrot.lane.b32.xlu0 %v416, 111
  %v430 = vpop.permute.xlu0 %429
  %431 = vrot.lane.b32.xlu0 %v420, 111
  %v432 = vpop.permute.xlu0 %431
  %433 = vrot.lane.b32.xlu0 %v424, 111
  %v434 = vpop.permute.xlu0 %433
  %435 = vrot.lane.b32.xlu0 %v428, 111
  %v436 = vpop.permute.xlu0 %435
  %vm437 = vcmask 908288
  %v438 = vsel %vm437, %v430, %v432
  %v439 = vsel %vm437, %v432, %v434
  %v440 = vsel %vm437, %v434, %v436
  %v446 = vmul.f32 %v406, %v430
  %v447 = vmul.f32 %v407, %v438
  %v448 = vmul.f32 %v408, %v439
  %v449 = vmul.f32 %v409, %v440
  %v450 = vmul.f32 %v410, %v436
  %456 = vrot.lane.b32.xlu0 %v446, 17
  %v457 = vpop.permute.xlu0 %456
  %458 = vrot.lane.b32.xlu0 %v447, 17
  %v459 = vpop.permute.xlu0 %458
  %460 = vrot.lane.b32.xlu0 %v448, 17
  %v461 = vpop.permute.xlu0 %460
  %462 = vrot.lane.b32.xlu0 %v449, 17
  %v463 = vpop.permute.xlu0 %462
  %464 = vrot.lane.b32.xlu0 %v450, 17
  %v465 = vpop.permute.xlu0 %464
  %vm466 = vcmask 138240
  %v467 = vsel %vm466, %v457, %v459
  %v468 = vsel %vm466, %v459, %v461
  %v469 = vsel %vm466, %v461, %v463
  %v470 = vsel %vm466, %v463, %v465
  %v475 = vmul.f32 %v402, %v467
  %v476 = vmul.f32 %v403, %v468
  %v477 = vmul.f32 %v404, %v469
  %v478 = vmul.f32 %v405, %v470
  %s479 = scalar_lea.vmem %s2, 1
  %v480 = vld [vmem:[%s479] ss:$8 sm:$0xf]
  %v482 = vlaneseq
  %v483 = vshrl.u32 %v482, 7
  %v484 = vsub.s32 0, %v483
  %v485 = vrot.slane %v480, %v484
  %v486 = vlaneseq
  %v487 = vshrl.u32 %v486, 7
  %v488 = vsub.s32 1, %v487
  %v489 = vrot.slane %v480, %v488
  %v490 = vlaneseq
  %v491 = vshrl.u32 %v490, 7
  %v492 = vsub.s32 2, %v491
  %v493 = vrot.slane %v480, %v492
  %v494 = vlaneseq
  %v495 = vshrl.u32 %v494, 7
  %v496 = vsub.s32 3, %v495
  %v497 = vrot.slane %v480, %v496
  %498 = vrot.lane.b32.xlu0 %v485, 112
  %v499 = vpop.permute.xlu0 %498
  %500 = vrot.lane.b32.xlu0 %v489, 112
  %v501 = vpop.permute.xlu0 %500
  %502 = vrot.lane.b32.xlu0 %v493, 112
  %v503 = vpop.permute.xlu0 %502
  %504 = vrot.lane.b32.xlu0 %v497, 112
  %v505 = vpop.permute.xlu0 %504
  %vm506 = vcmask 916480
  %v507 = vsel %vm506, %v499, %v501
  %v508 = vsel %vm506, %v501, %v503
  %v509 = vsel %vm506, %v503, %v505
  %v515 = vmul.f32 %v406, %v499
  %v516 = vmul.f32 %v407, %v507
  %v517 = vmul.f32 %v408, %v508
  %v518 = vmul.f32 %v409, %v509
  %v519 = vmul.f32 %v410, %v505
  %525 = vrot.lane.b32.xlu0 %v515, 16
  %v526 = vpop.permute.xlu0 %525
  %527 = vrot.lane.b32.xlu0 %v516, 16
  %v528 = vpop.permute.xlu0 %527
  %529 = vrot.lane.b32.xlu0 %v517, 16
  %v530 = vpop.permute.xlu0 %529
  %531 = vrot.lane.b32.xlu0 %v518, 16
  %v532 = vpop.permute.xlu0 %531
  %533 = vrot.lane.b32.xlu0 %v519, 16
  %v534 = vpop.permute.xlu0 %533
  %vm535 = vcmask 130048
  %v536 = vsel %vm535, %v526, %v528
  %v537 = vsel %vm535, %v528, %v530
  %v538 = vsel %vm535, %v530, %v532
  %v539 = vsel %vm535, %v532, %v534
  %v544 = vmul.f32 %v402, %v536
  %v545 = vmul.f32 %v403, %v537
  %v546 = vmul.f32 %v404, %v538
  %v547 = vmul.f32 %v405, %v539
  %v548 = vmax.f32 %v475, %v544
  %v549 = vmax.f32 %v476, %v545
  %v550 = vmax.f32 %v477, %v546
  %v551 = vmax.f32 %v478, %v547
  %s552 = scalar_lea.vmem %s2, 2
  %v553 = vld [vmem:[%s552] ss:$8 sm:$0xf]
  %v555 = vlaneseq
  %v556 = vshrl.u32 %v555, 7
  %v557 = vsub.s32 0, %v556
  %v558 = vrot.slane %v553, %v557
  %v559 = vlaneseq
  %v560 = vshrl.u32 %v559, 7
  %v561 = vsub.s32 1, %v560
  %v562 = vrot.slane %v553, %v561
  %v563 = vlaneseq
  %v564 = vshrl.u32 %v563, 7
  %v565 = vsub.s32 2, %v564
  %v566 = vrot.slane %v553, %v565
  %v567 = vlaneseq
  %v568 = vshrl.u32 %v567, 7
  %v569 = vsub.s32 3, %v568
  %v570 = vrot.slane %v553, %v569
  %571 = vrot.lane.b32.xlu0 %v558, 113
  %v572 = vpop.permute.xlu0 %571
  %573 = vrot.lane.b32.xlu0 %v562, 113
  %v574 = vpop.permute.xlu0 %573
  %575 = vrot.lane.b32.xlu0 %v566, 113
  %v576 = vpop.permute.xlu0 %575
  %577 = vrot.lane.b32.xlu0 %v570, 113
  %v578 = vpop.permute.xlu0 %577
  %vm579 = vcmask 924672
  %v580 = vsel %vm579, %v572, %v574
  %v581 = vsel %vm579, %v574, %v576
  %v582 = vsel %vm579, %v576, %v578
  %v588 = vmul.f32 %v406, %v572
  %v589 = vmul.f32 %v407, %v580
  %v590 = vmul.f32 %v408, %v581
  %v591 = vmul.f32 %v409, %v582
  %v592 = vmul.f32 %v410, %v578
  %598 = vrot.lane.b32.xlu0 %v588, 15
  %v599 = vpop.permute.xlu0 %598
  %600 = vrot.lane.b32.xlu0 %v589, 15
  %v601 = vpop.permute.xlu0 %600
  %602 = vrot.lane.b32.xlu0 %v590, 15
  %v603 = vpop.permute.xlu0 %602
  %604 = vrot.lane.b32.xlu0 %v591, 15
  %v605 = vpop.permute.xlu0 %604
  %606 = vrot.lane.b32.xlu0 %v592, 15
  %v607 = vpop.permute.xlu0 %606
  %vm608 = vcmask 121856
  %v609 = vsel %vm608, %v599, %v601
  %v610 = vsel %vm608, %v601, %v603
  %v611 = vsel %vm608, %v603, %v605
  %v612 = vsel %vm608, %v605, %v607
  %v617 = vmul.f32 %v402, %v609
  %v618 = vmul.f32 %v403, %v610
  %v619 = vmul.f32 %v404, %v611
  %v620 = vmul.f32 %v405, %v612
  %v621 = vmax.f32 %v548, %v617
  %v622 = vmax.f32 %v549, %v618
  %v623 = vmax.f32 %v550, %v619
  %v624 = vmax.f32 %v551, %v620
  %s625 = scalar_lea.vmem %s2, 3
  %v626 = vld [vmem:[%s625] ss:$8 sm:$0xf]
  %v628 = vlaneseq
  %v629 = vshrl.u32 %v628, 7
  %v630 = vsub.s32 0, %v629
  %v631 = vrot.slane %v626, %v630
  %v632 = vlaneseq
  %v633 = vshrl.u32 %v632, 7
  %v634 = vsub.s32 1, %v633
  %v635 = vrot.slane %v626, %v634
  %v636 = vlaneseq
  %v637 = vshrl.u32 %v636, 7
  %v638 = vsub.s32 2, %v637
  %v639 = vrot.slane %v626, %v638
  %v640 = vlaneseq
  %v641 = vshrl.u32 %v640, 7
  %v642 = vsub.s32 3, %v641
  %v643 = vrot.slane %v626, %v642
  %644 = vrot.lane.b32.xlu0 %v631, 127
  %v645 = vpop.permute.xlu0 %644
  %646 = vrot.lane.b32.xlu0 %v635, 127
  %v647 = vpop.permute.xlu0 %646
  %648 = vrot.lane.b32.xlu0 %v639, 127
  %v649 = vpop.permute.xlu0 %648
  %650 = vrot.lane.b32.xlu0 %v643, 127
  %v651 = vpop.permute.xlu0 %650
  %vm652 = vcmask 1039360
  %v653 = vsel %vm652, %v645, %v647
  %v654 = vsel %vm652, %v647, %v649
  %v655 = vsel %vm652, %v649, %v651
  %v661 = vmul.f32 %v406, %v645
  %v662 = vmul.f32 %v407, %v653
  %v663 = vmul.f32 %v408, %v654
  %v664 = vmul.f32 %v409, %v655
  %v665 = vmul.f32 %v410, %v651
  %671 = vrot.lane.b32.xlu0 %v661, 1
  %v672 = vpop.permute.xlu0 %671
  %673 = vrot.lane.b32.xlu0 %v662, 1
  %v674 = vpop.permute.xlu0 %673
  %675 = vrot.lane.b32.xlu0 %v663, 1
  %v676 = vpop.permute.xlu0 %675
  %677 = vrot.lane.b32.xlu0 %v664, 1
  %v678 = vpop.permute.xlu0 %677
  %679 = vrot.lane.b32.xlu0 %v665, 1
  %v680 = vpop.permute.xlu0 %679
  %vm681 = vcmask 7168
  %v682 = vsel %vm681, %v672, %v674
  %v683 = vsel %vm681, %v674, %v676
  %v684 = vsel %vm681, %v676, %v678
  %v685 = vsel %vm681, %v678, %v680
  %v690 = vmul.f32 %v402, %v682
  %v691 = vmul.f32 %v403, %v683
  %v692 = vmul.f32 %v404, %v684
  %v693 = vmul.f32 %v405, %v685
  %v694 = vmax.f32 %v621, %v690
  %v695 = vmax.f32 %v622, %v691
  %v696 = vmax.f32 %v623, %v692
  %v697 = vmax.f32 %v624, %v693
  %s698 = scalar_lea.vmem %s2, 4
  %v699 = vld [vmem:[%s698] ss:$8 sm:$0xf]
  %v701 = vlaneseq
  %v702 = vshrl.u32 %v701, 7
  %v703 = vsub.s32 0, %v702
  %v704 = vrot.slane %v699, %v703
  %v705 = vlaneseq
  %v706 = vshrl.u32 %v705, 7
  %v707 = vsub.s32 1, %v706
  %v708 = vrot.slane %v699, %v707
  %v709 = vlaneseq
  %v710 = vshrl.u32 %v709, 7
  %v711 = vsub.s32 2, %v710
  %v712 = vrot.slane %v699, %v711
  %v713 = vlaneseq
  %v714 = vshrl.u32 %v713, 7
  %v715 = vsub.s32 3, %v714
  %v716 = vrot.slane %v699, %v715
  %v721 = vmul.f32 %v407, %v704
  %v722 = vmul.f32 %v408, %v708
  %v723 = vmul.f32 %v409, %v712
  %v724 = vmul.f32 %v410, %v716
  %v725 = vmul.f32 %v402, %v721
  %v726 = vmul.f32 %v403, %v722
  %v727 = vmul.f32 %v404, %v723
  %v728 = vmul.f32 %v405, %v724
  %v729 = vmax.f32 %v694, %v725
  %v730 = vmax.f32 %v695, %v726
  %v731 = vmax.f32 %v696, %v727
  %v732 = vmax.f32 %v697, %v728
  %v733 = vld [vmem:[#allocation2 + $0x58] sm:$0xff]
  %s734 = scalar_lea.vmem %s2, 5
  %v735 = vld [vmem:[%s734] ss:$8 sm:$0xf]
  %v737 = vlaneseq
  %v738 = vshrl.u32 %v737, 7
  %v739 = vsub.s32 0, %v738
  %v740 = vrot.slane %v735, %v739
  %v741 = vlaneseq
  %v742 = vshrl.u32 %v741, 7
  %v743 = vsub.s32 1, %v742
  %v744 = vrot.slane %v735, %v743
  %v745 = vlaneseq
  %v746 = vshrl.u32 %v745, 7
  %v747 = vsub.s32 2, %v746
  %v748 = vrot.slane %v735, %v747
  %v749 = vlaneseq
  %v750 = vshrl.u32 %v749, 7
  %v751 = vsub.s32 3, %v750
  %v752 = vrot.slane %v735, %v751
  %753 = vrot.lane.b32.xlu0 %v740, 1
  %v754 = vpop.permute.xlu0 %753
  %755 = vrot.lane.b32.xlu0 %v744, 1
  %v756 = vpop.permute.xlu0 %755
  %757 = vrot.lane.b32.xlu0 %v748, 1
  %v758 = vpop.permute.xlu0 %757
  %759 = vrot.lane.b32.xlu0 %v752, 1
  %v760 = vpop.permute.xlu0 %759
  %v761 = vsel %vm681, %v754, %v756
  %v762 = vsel %vm681, %v756, %v758
  %v763 = vsel %vm681, %v758, %v760
  %v769 = vmul.f32 %v407, %v754
  %v770 = vmul.f32 %v408, %v761
  %v771 = vmul.f32 %v409, %v762
  %v772 = vmul.f32 %v410, %v763
  %v773 = vmul.f32 %v733, %v760
  %779 = vrot.lane.b32.xlu0 %v769, 127
  %v780 = vpop.permute.xlu0 %779
  %781 = vrot.lane.b32.xlu0 %v770, 127
  %v782 = vpop.permute.xlu0 %781
  %783 = vrot.lane.b32.xlu0 %v771, 127
  %v784 = vpop.permute.xlu0 %783
  %785 = vrot.lane.b32.xlu0 %v772, 127
  %v786 = vpop.permute.xlu0 %785
  %787 = vrot.lane.b32.xlu0 %v773, 127
  %v788 = vpop.permute.xlu0 %787
  %v789 = vsel %vm652, %v780, %v782
  %v790 = vsel %vm652, %v782, %v784
  %v791 = vsel %vm652, %v784, %v786
  %v792 = vsel %vm652, %v786, %v788
  %v797 = vmul.f32 %v402, %v789
  %v798 = vmul.f32 %v403, %v790
  %v799 = vmul.f32 %v404, %v791
  %v800 = vmul.f32 %v405, %v792
  %v801 = vmax.f32 %v729, %v797
  %v802 = vmax.f32 %v730, %v798
  %v803 = vmax.f32 %v731, %v799
  %v804 = vmax.f32 %v732, %v800
  %s805 = scalar_lea.vmem %s2, 6
  %v806 = vld [vmem:[%s805] ss:$8 sm:$0xf]
  %v808 = vlaneseq
  %v809 = vshrl.u32 %v808, 7
  %v810 = vsub.s32 0, %v809
  %v811 = vrot.slane %v806, %v810
  %v812 = vlaneseq
  %v813 = vshrl.u32 %v812, 7
  %v814 = vsub.s32 1, %v813
  %v815 = vrot.slane %v806, %v814
  %v816 = vlaneseq
  %v817 = vshrl.u32 %v816, 7
  %v818 = vsub.s32 2, %v817
  %v819 = vrot.slane %v806, %v818
  %v820 = vlaneseq
  %v821 = vshrl.u32 %v820, 7
  %v822 = vsub.s32 3, %v821
  %v823 = vrot.slane %v806, %v822
  %824 = vrot.lane.b32.xlu0 %v811, 15
  %v825 = vpop.permute.xlu0 %824
  %826 = vrot.lane.b32.xlu0 %v815, 15
  %v827 = vpop.permute.xlu0 %826
  %828 = vrot.lane.b32.xlu0 %v819, 15
  %v829 = vpop.permute.xlu0 %828
  %830 = vrot.lane.b32.xlu0 %v823, 15
  %v831 = vpop.permute.xlu0 %830
  %v832 = vsel %vm608, %v825, %v827
  %v833 = vsel %vm608, %v827, %v829
  %v834 = vsel %vm608, %v829, %v831
  %v840 = vmul.f32 %v407, %v825
  %v841 = vmul.f32 %v408, %v832
  %v842 = vmul.f32 %v409, %v833
  %v843 = vmul.f32 %v410, %v834
  %v844 = vmul.f32 %v733, %v831
  %850 = vrot.lane.b32.xlu0 %v840, 113
  %v851 = vpop.permute.xlu0 %850
  %852 = vrot.lane.b32.xlu0 %v841, 113
  %v853 = vpop.permute.xlu0 %852
  %854 = vrot.lane.b32.xlu0 %v842, 113
  %v855 = vpop.permute.xlu0 %854
  %856 = vrot.lane.b32.xlu0 %v843, 113
  %v857 = vpop.permute.xlu0 %856
  %858 = vrot.lane.b32.xlu0 %v844, 113
  %v859 = vpop.permute.xlu0 %858
  %v860 = vsel %vm579, %v851, %v853
  %v861 = vsel %vm579, %v853, %v855
  %v862 = vsel %vm579, %v855, %v857
  %v863 = vsel %vm579, %v857, %v859
  %v868 = vmul.f32 %v402, %v860
  %v869 = vmul.f32 %v403, %v861
  %v870 = vmul.f32 %v404, %v862
  %v871 = vmul.f32 %v405, %v863
  %v872 = vmax.f32 %v801, %v868
  %v873 = vmax.f32 %v802, %v869
  %v874 = vmax.f32 %v803, %v870
  %v875 = vmax.f32 %v804, %v871
  %s876 = scalar_lea.vmem %s2, 7
  %v877 = vld [vmem:[%s876] ss:$8 sm:$0xf]
  %v879 = vlaneseq
  %v880 = vshrl.u32 %v879, 7
  %v881 = vsub.s32 0, %v880
  %v882 = vrot.slane %v877, %v881
  %v883 = vlaneseq
  %v884 = vshrl.u32 %v883, 7
  %v885 = vsub.s32 1, %v884
  %v886 = vrot.slane %v877, %v885
  %v887 = vlaneseq
  %v888 = vshrl.u32 %v887, 7
  %v889 = vsub.s32 2, %v888
  %v890 = vrot.slane %v877, %v889
  %v891 = vlaneseq
  %v892 = vshrl.u32 %v891, 7
  %v893 = vsub.s32 3, %v892
  %v894 = vrot.slane %v877, %v893
  %895 = vrot.lane.b32.xlu0 %v882, 16
  %v896 = vpop.permute.xlu0 %895
  %897 = vrot.lane.b32.xlu0 %v886, 16
  %v898 = vpop.permute.xlu0 %897
  %899 = vrot.lane.b32.xlu0 %v890, 16
  %v900 = vpop.permute.xlu0 %899
  %901 = vrot.lane.b32.xlu0 %v894, 16
  %v902 = vpop.permute.xlu0 %901
  %v903 = vsel %vm535, %v896, %v898
  %v904 = vsel %vm535, %v898, %v900
  %v905 = vsel %vm535, %v900, %v902
  %v911 = vmul.f32 %v407, %v896
  %v912 = vmul.f32 %v408, %v903
  %v913 = vmul.f32 %v409, %v904
  %v914 = vmul.f32 %v410, %v905
  %v915 = vmul.f32 %v733, %v902
  %921 = vrot.lane.b32.xlu0 %v911, 112
  %v922 = vpop.permute.xlu0 %921
  %923 = vrot.lane.b32.xlu0 %v912, 112
  %v924 = vpop.permute.xlu0 %923
  %925 = vrot.lane.b32.xlu0 %v913, 112
  %v926 = vpop.permute.xlu0 %925
  %927 = vrot.lane.b32.xlu0 %v914, 112
  %v928 = vpop.permute.xlu0 %927
  %929 = vrot.lane.b32.xlu0 %v915, 112
  %v930 = vpop.permute.xlu0 %929
  %v931 = vsel %vm506, %v922, %v924
  %v932 = vsel %vm506, %v924, %v926
  %v933 = vsel %vm506, %v926, %v928
  %v934 = vsel %vm506, %v928, %v930
  %v939 = vmul.f32 %v402, %v931
  %v940 = vmul.f32 %v403, %v932
  %v941 = vmul.f32 %v404, %v933
  %v942 = vmul.f32 %v405, %v934
  %v943 = vmax.f32 %v872, %v939
  %v944 = vmax.f32 %v873, %v940
  %v945 = vmax.f32 %v874, %v941
  %v946 = vmax.f32 %v875, %v942
  %s947 = scalar_lea.vmem %s2, 32
  %v948 = vld [vmem:[%s947] ss:$8 sm:$0xf]
  %v950 = vlaneseq
  %v951 = vshrl.u32 %v950, 7
  %v952 = vsub.s32 0, %v951
  %v953 = vrot.slane %v948, %v952
  %v954 = vlaneseq
  %v955 = vshrl.u32 %v954, 7
  %v956 = vsub.s32 1, %v955
  %v957 = vrot.slane %v948, %v956
  %v958 = vlaneseq
  %v959 = vshrl.u32 %v958, 7
  %v960 = vsub.s32 2, %v959
  %v961 = vrot.slane %v948, %v960
  %v962 = vlaneseq
  %v963 = vshrl.u32 %v962, 7
  %v964 = vsub.s32 3, %v963
  %v965 = vrot.slane %v948, %v964
  %966 = vrot.lane.b32.xlu0 %v953, 17
  %v967 = vpop.permute.xlu0 %966
  %968 = vrot.lane.b32.xlu0 %v957, 17
  %v969 = vpop.permute.xlu0 %968
  %970 = vrot.lane.b32.xlu0 %v961, 17
  %v971 = vpop.permute.xlu0 %970
  %972 = vrot.lane.b32.xlu0 %v965, 17
  %v973 = vpop.permute.xlu0 %972
  %v974 = vsel %vm466, %v967, %v969
  %v975 = vsel %vm466, %v969, %v971
  %v976 = vsel %vm466, %v971, %v973
  %v982 = vmul.f32 %v407, %v967
  %v983 = vmul.f32 %v408, %v974
  %v984 = vmul.f32 %v409, %v975
  %v985 = vmul.f32 %v410, %v976
  %v986 = vmul.f32 %v733, %v973
  %992 = vrot.lane.b32.xlu0 %v982, 111
  %v993 = vpop.permute.xlu0 %992
  %994 = vrot.lane.b32.xlu0 %v983, 111
  %v995 = vpop.permute.xlu0 %994
  %996 = vrot.lane.b32.xlu0 %v984, 111
  %v997 = vpop.permute.xlu0 %996
  %998 = vrot.lane.b32.xlu0 %v985, 111
  %v999 = vpop.permute.xlu0 %998
  %1000 = vrot.lane.b32.xlu0 %v986, 111
  %v1001 = vpop.permute.xlu0 %1000
  %v1002 = vsel %vm437, %v993, %v995
  %v1003 = vsel %vm437, %v995, %v997
  %v1004 = vsel %vm437, %v997, %v999
  %v1005 = vsel %vm437, %v999, %v1001
  %v1010 = vmul.f32 %v402, %v1002
  %v1011 = vmul.f32 %v403, %v1003
  %v1012 = vmul.f32 %v404, %v1004
  %v1013 = vmul.f32 %v405, %v1005
  %v1014 = vmax.f32 %v943, %v1010
  %v1015 = vmax.f32 %v944, %v1011
  %v1016 = vmax.f32 %v945, %v1012
  %v1017 = vmax.f32 %v946, %v1013
  %v1018 = vsub.f32 %v475, %v1014
  %v1019 = vsub.f32 %v476, %v1015
  %v1020 = vsub.f32 %v477, %v1016
  %v1021 = vsub.f32 %v478, %v1017
  %v1022 = vmul.f32 %v1018, 1.442695
  %v1023 = vpow.pop %v1022
  %v1024 = vmul.f32 %v1019, 1.442695
  %v1025 = vpow.pop %v1024
  %v1026 = vmul.f32 %v1020, 1.442695
  %v1027 = vpow.pop %v1026
  %v1028 = vmul.f32 %v1021, 1.442695
  %v1029 = vpow.pop %v1028
  %v1030 = vadd.f32 %v1023, 0.0
  %v1031 = vadd.f32 %v1025, 0.0
  %v1032 = vadd.f32 %v1027, 0.0
  %v1033 = vadd.f32 %v1029, 0.0
  %v1034 = vld [vmem:[#allocation2 + $0x60] sm:$0xff]
  %v1035 = vld [vmem:[#allocation2 + $0x68] sm:$0xff]
  %v1036 = vld [vmem:[#allocation2 + $0x70] sm:$0xff]
  %v1037 = vld [vmem:[#allocation2 + $0x78] sm:$0xff]
  %v1038 = vld [vmem:[#allocation2 + $0x80] sm:$0xff]
  %v1039 = vmul.f32 %v1034, %v430
  %v1040 = vmul.f32 %v1035, %v438
  %v1041 = vmul.f32 %v1036, %v439
  %v1042 = vmul.f32 %v1037, %v440
  %v1043 = vmul.f32 %v1038, %v436
  %1049 = vrot.lane.b32.xlu0 %v1039, 17
  %v1050 = vpop.permute.xlu0 %1049
  %1051 = vrot.lane.b32.xlu0 %v1040, 17
  %v1052 = vpop.permute.xlu0 %1051
  %1053 = vrot.lane.b32.xlu0 %v1041, 17
  %v1054 = vpop.permute.xlu0 %1053
  %1055 = vrot.lane.b32.xlu0 %v1042, 17
  %v1056 = vpop.permute.xlu0 %1055
  %1057 = vrot.lane.b32.xlu0 %v1043, 17
  %v1058 = vpop.permute.xlu0 %1057
  %v1059 = vsel %vm466, %v1050, %v1052
  %v1060 = vsel %vm466, %v1052, %v1054
  %v1061 = vsel %vm466, %v1054, %v1056
  %v1062 = vsel %vm466, %v1056, %v1058
  %v1067 = vmul.f32 %v1023, %v1059
  %v1068 = vmul.f32 %v1025, %v1060
  %v1069 = vmul.f32 %v1027, %v1061
  %v1070 = vmul.f32 %v1029, %v1062
  %v1071 = vadd.f32 %v1067, 0.0
  %v1072 = vadd.f32 %v1068, 0.0
  %v1073 = vadd.f32 %v1069, 0.0
  %v1074 = vadd.f32 %v1070, 0.0
  %v1075 = vsub.f32 %v544, %v1014
  %v1076 = vsub.f32 %v545, %v1015
  %v1077 = vsub.f32 %v546, %v1016
  %v1078 = vsub.f32 %v547, %v1017
  %v1079 = vmul.f32 %v1075, 1.442695
  %v1080 = vpow.pop %v1079
  %v1081 = vmul.f32 %v1076, 1.442695
  %v1082 = vpow.pop %v1081
  %v1083 = vmul.f32 %v1077, 1.442695
  %v1084 = vpow.pop %v1083
  %v1085 = vmul.f32 %v1078, 1.442695
  %v1086 = vpow.pop %v1085
  %v1087 = vadd.f32 %v1030, %v1080
  %v1088 = vadd.f32 %v1031, %v1082
  %v1089 = vadd.f32 %v1032, %v1084
  %v1090 = vadd.f32 %v1033, %v1086
  %v1091 = vld [vmem:[#allocation2 + $0x90] sm:$0xff]
  %v1092 = vld [vmem:[#allocation2 + $0x98] sm:$0xff]
  %v1093 = vld [vmem:[#allocation2 + $0xa0] sm:$0xff]
  %v1094 = vld [vmem:[#allocation2 + $0xa8] sm:$0xff]
  %v1095 = vld [vmem:[#allocation2 + $0xb0] sm:$0xff]
  %v1096 = vmul.f32 %v1091, %v499
  %v1097 = vmul.f32 %v1092, %v507
  %v1098 = vmul.f32 %v1093, %v508
  %v1099 = vmul.f32 %v1094, %v509
  %v1100 = vmul.f32 %v1095, %v505
  %1106 = vrot.lane.b32.xlu0 %v1096, 16
  %v1107 = vpop.permute.xlu0 %1106
  %1108 = vrot.lane.b32.xlu0 %v1097, 16
  %v1109 = vpop.permute.xlu0 %1108
  %1110 = vrot.lane.b32.xlu0 %v1098, 16
  %v1111 = vpop.permute.xlu0 %1110
  %1112 = vrot.lane.b32.xlu0 %v1099, 16
  %v1113 = vpop.permute.xlu0 %1112
  %1114 = vrot.lane.b32.xlu0 %v1100, 16
  %v1115 = vpop.permute.xlu0 %1114
  %v1116 = vsel %vm535, %v1107, %v1109
  %v1117 = vsel %vm535, %v1109, %v1111
  %v1118 = vsel %vm535, %v1111, %v1113
  %v1119 = vsel %vm535, %v1113, %v1115
  %v1124 = vmul.f32 %v1080, %v1116
  %v1125 = vmul.f32 %v1082, %v1117
  %v1126 = vmul.f32 %v1084, %v1118
  %v1127 = vmul.f32 %v1086, %v1119
  %v1128 = vadd.f32 %v1071, %v1124
  %v1129 = vadd.f32 %v1072, %v1125
  %v1130 = vadd.f32 %v1073, %v1126
  %v1131 = vadd.f32 %v1074, %v1127
  %v1132 = vsub.f32 %v617, %v1014
  %v1133 = vsub.f32 %v618, %v1015
  %v1134 = vsub.f32 %v619, %v1016
  %v1135 = vsub.f32 %v620, %v1017
  %v1136 = vmul.f32 %v1132, 1.442695
  %v1137 = vpow.pop %v1136
  %v1138 = vmul.f32 %v1133, 1.442695
  %v1139 = vpow.pop %v1138
  %v1140 = vmul.f32 %v1134, 1.442695
  %v1141 = vpow.pop %v1140
  %v1142 = vmul.f32 %v1135, 1.442695
  %v1143 = vpow.pop %v1142
  %v1144 = vadd.f32 %v1087, %v1137
  %v1145 = vadd.f32 %v1088, %v1139
  %v1146 = vadd.f32 %v1089, %v1141
  %v1147 = vadd.f32 %v1090, %v1143
  %v1148 = vld [vmem:[#allocation2 + $0xc0] sm:$0xff]
  %v1149 = vld [vmem:[#allocation2 + $0xc8] sm:$0xff]
  %v1150 = vld [vmem:[#allocation2 + $0xd0] sm:$0xff]
  %v1151 = vld [vmem:[#allocation2 + $0xd8] sm:$0xff]
  %v1152 = vld [vmem:[#allocation2 + $0xe0] sm:$0xff]
  %v1153 = vmul.f32 %v1148, %v572
  %v1154 = vmul.f32 %v1149, %v580
  %v1155 = vmul.f32 %v1150, %v581
  %v1156 = vmul.f32 %v1151, %v582
  %v1157 = vmul.f32 %v1152, %v578
  %1163 = vrot.lane.b32.xlu0 %v1153, 15
  %v1164 = vpop.permute.xlu0 %1163
  %1165 = vrot.lane.b32.xlu0 %v1154, 15
  %v1166 = vpop.permute.xlu0 %1165
  %1167 = vrot.lane.b32.xlu0 %v1155, 15
  %v1168 = vpop.permute.xlu0 %1167
  %1169 = vrot.lane.b32.xlu0 %v1156, 15
  %v1170 = vpop.permute.xlu0 %1169
  %1171 = vrot.lane.b32.xlu0 %v1157, 15
  %v1172 = vpop.permute.xlu0 %1171
  %v1173 = vsel %vm608, %v1164, %v1166
  %v1174 = vsel %vm608, %v1166, %v1168
  %v1175 = vsel %vm608, %v1168, %v1170
  %v1176 = vsel %vm608, %v1170, %v1172
  %v1181 = vmul.f32 %v1137, %v1173
  %v1182 = vmul.f32 %v1139, %v1174
  %v1183 = vmul.f32 %v1141, %v1175
  %v1184 = vmul.f32 %v1143, %v1176
  %v1185 = vadd.f32 %v1128, %v1181
  %v1186 = vadd.f32 %v1129, %v1182
  %v1187 = vadd.f32 %v1130, %v1183
  %v1188 = vadd.f32 %v1131, %v1184
  %v1189 = vsub.f32 %v690, %v1014
  %v1190 = vsub.f32 %v691, %v1015
  %v1191 = vsub.f32 %v692, %v1016
  %v1192 = vsub.f32 %v693, %v1017
  %v1193 = vmul.f32 %v1189, 1.442695
  %v1194 = vpow.pop %v1193
  %v1195 = vmul.f32 %v1190, 1.442695
  %v1196 = vpow.pop %v1195
  %v1197 = vmul.f32 %v1191, 1.442695
  %v1198 = vpow.pop %v1197
  %v1199 = vmul.f32 %v1192, 1.442695
  %v1200 = vpow.pop %v1199
  %v1201 = vadd.f32 %v1144, %v1194
  %v1202 = vadd.f32 %v1145, %v1196
  %v1203 = vadd.f32 %v1146, %v1198
  %v1204 = vadd.f32 %v1147, %v1200
  %v1205 = vld [vmem:[#allocation2 + $0xf0] sm:$0xff]
  %v1206 = vld [vmem:[#allocation2 + $0xf8] sm:$0xff]
  %v1207 = vld [vmem:[#allocation2 + $0x100] sm:$0xff]
  %v1208 = vld [vmem:[#allocation2 + $0x108] sm:$0xff]
  %v1209 = vld [vmem:[#allocation2 + $0x110] sm:$0xff]
  %v1210 = vmul.f32 %v1205, %v645
  %v1211 = vmul.f32 %v1206, %v653
  %v1212 = vmul.f32 %v1207, %v654
  %v1213 = vmul.f32 %v1208, %v655
  %v1214 = vmul.f32 %v1209, %v651
  %1220 = vrot.lane.b32.xlu0 %v1210, 1
  %v1221 = vpop.permute.xlu0 %1220
  %1222 = vrot.lane.b32.xlu0 %v1211, 1
  %v1223 = vpop.permute.xlu0 %1222
  %1224 = vrot.lane.b32.xlu0 %v1212, 1
  %v1225 = vpop.permute.xlu0 %1224
  %1226 = vrot.lane.b32.xlu0 %v1213, 1
  %v1227 = vpop.permute.xlu0 %1226
  %1228 = vrot.lane.b32.xlu0 %v1214, 1
  %v1229 = vpop.permute.xlu0 %1228
  %v1230 = vsel %vm681, %v1221, %v1223
  %v1231 = vsel %vm681, %v1223, %v1225
  %v1232 = vsel %vm681, %v1225, %v1227
  %v1233 = vsel %vm681, %v1227, %v1229
  %v1238 = vmul.f32 %v1194, %v1230
  %v1239 = vmul.f32 %v1196, %v1231
  %v1240 = vmul.f32 %v1198, %v1232
  %v1241 = vmul.f32 %v1200, %v1233
  %v1242 = vadd.f32 %v1185, %v1238
  %v1243 = vadd.f32 %v1186, %v1239
  %v1244 = vadd.f32 %v1187, %v1240
  %v1245 = vadd.f32 %v1188, %v1241
  %v1246 = vsub.f32 %v725, %v1014
  %v1247 = vsub.f32 %v726, %v1015
  %v1248 = vsub.f32 %v727, %v1016
  %v1249 = vsub.f32 %v728, %v1017
  %v1250 = vmul.f32 %v1246, 1.442695
  %v1251 = vpow.pop %v1250
  %v1252 = vmul.f32 %v1247, 1.442695
  %v1253 = vpow.pop %v1252
  %v1254 = vmul.f32 %v1248, 1.442695
  %v1255 = vpow.pop %v1254
  %v1256 = vmul.f32 %v1249, 1.442695
  %v1257 = vpow.pop %v1256
  %v1258 = vadd.f32 %v1201, %v1251
  %v1259 = vadd.f32 %v1202, %v1253
  %v1260 = vadd.f32 %v1203, %v1255
  %v1261 = vadd.f32 %v1204, %v1257
  %v1262 = vld [vmem:[#allocation2 + $0x128] sm:$0xff]
  %v1263 = vld [vmem:[#allocation2 + $0x130] sm:$0xff]
  %v1264 = vld [vmem:[#allocation2 + $0x138] sm:$0xff]
  %v1265 = vld [vmem:[#allocation2 + $0x140] sm:$0xff]
  %v1266 = vmul.f32 %v1262, %v704
  %v1267 = vmul.f32 %v1263, %v708
  %v1268 = vmul.f32 %v1264, %v712
  %v1269 = vmul.f32 %v1265, %v716
  %v1270 = vmul.f32 %v1251, %v1266
  %v1271 = vmul.f32 %v1253, %v1267
  %v1272 = vmul.f32 %v1255, %v1268
  %v1273 = vmul.f32 %v1257, %v1269
  %v1274 = vadd.f32 %v1242, %v1270
  %v1275 = vadd.f32 %v1243, %v1271
  %v1276 = vadd.f32 %v1244, %v1272
  %v1277 = vadd.f32 %v1245, %v1273
  %v1278 = vsub.f32 %v797, %v1014
  %v1279 = vsub.f32 %v798, %v1015
  %v1280 = vsub.f32 %v799, %v1016
  %v1281 = vsub.f32 %v800, %v1017
  %v1282 = vmul.f32 %v1278, 1.442695
  %v1283 = vpow.pop %v1282
  %v1284 = vmul.f32 %v1279, 1.442695
  %v1285 = vpow.pop %v1284
  %v1286 = vmul.f32 %v1280, 1.442695
  %v1287 = vpow.pop %v1286
  %v1288 = vmul.f32 %v1281, 1.442695
  %v1289 = vpow.pop %v1288
  %v1290 = vadd.f32 %v1258, %v1283
  %v1291 = vadd.f32 %v1259, %v1285
  %v1292 = vadd.f32 %v1260, %v1287
  %v1293 = vadd.f32 %v1261, %v1289
  %v1294 = vld [vmem:[#allocation2 + $0x158] sm:$0xff]
  %v1295 = vld [vmem:[#allocation2 + $0x160] sm:$0xff]
  %v1296 = vld [vmem:[#allocation2 + $0x168] sm:$0xff]
  %v1297 = vld [vmem:[#allocation2 + $0x170] sm:$0xff]
  %v1298 = vld [vmem:[#allocation2 + $0x178] sm:$0xff]
  %v1299 = vmul.f32 %v1294, %v754
  %v1300 = vmul.f32 %v1295, %v761
  %v1301 = vmul.f32 %v1296, %v762
  %v1302 = vmul.f32 %v1297, %v763
  %v1303 = vmul.f32 %v1298, %v760
  %1309 = vrot.lane.b32.xlu0 %v1299, 127
  %v1310 = vpop.permute.xlu0 %1309
  %1311 = vrot.lane.b32.xlu0 %v1300, 127
  %v1312 = vpop.permute.xlu0 %1311
  %1313 = vrot.lane.b32.xlu0 %v1301, 127
  %v1314 = vpop.permute.xlu0 %1313
  %1315 = vrot.lane.b32.xlu0 %v1302, 127
  %v1316 = vpop.permute.xlu0 %1315
  %1317 = vrot.lane.b32.xlu0 %v1303, 127
  %v1318 = vpop.permute.xlu0 %1317
  %v1319 = vsel %vm652, %v1310, %v1312
  %v1320 = vsel %vm652, %v1312, %v1314
  %v1321 = vsel %vm652, %v1314, %v1316
  %v1322 = vsel %vm652, %v1316, %v1318
  %v1327 = vmul.f32 %v1283, %v1319
  %v1328 = vmul.f32 %v1285, %v1320
  %v1329 = vmul.f32 %v1287, %v1321
  %v1330 = vmul.f32 %v1289, %v1322
  %v1331 = vadd.f32 %v1274, %v1327
  %v1332 = vadd.f32 %v1275, %v1328
  %v1333 = vadd.f32 %v1276, %v1329
  %v1334 = vadd.f32 %v1277, %v1330
  %v1335 = vsub.f32 %v868, %v1014
  %v1336 = vsub.f32 %v869, %v1015
  %v1337 = vsub.f32 %v870, %v1016
  %v1338 = vsub.f32 %v871, %v1017
  %v1339 = vmul.f32 %v1335, 1.442695
  %v1340 = vpow.pop %v1339
  %v1341 = vmul.f32 %v1336, 1.442695
  %v1342 = vpow.pop %v1341
  %v1343 = vmul.f32 %v1337, 1.442695
  %v1344 = vpow.pop %v1343
  %v1345 = vmul.f32 %v1338, 1.442695
  %v1346 = vpow.pop %v1345
  %v1347 = vadd.f32 %v1290, %v1340
  %v1348 = vadd.f32 %v1291, %v1342
  %v1349 = vadd.f32 %v1292, %v1344
  %v1350 = vadd.f32 %v1293, %v1346
  %v1351 = vld [vmem:[#allocation2 + $0x188] sm:$0xff]
  %v1352 = vld [vmem:[#allocation2 + $0x190] sm:$0xff]
  %v1353 = vld [vmem:[#allocation2 + $0x198] sm:$0xff]
  %v1354 = vld [vmem:[#allocation2 + $0x1a0] sm:$0xff]
  %v1355 = vld [vmem:[#allocation2 + $0x1a8] sm:$0xff]
  %v1356 = vmul.f32 %v1351, %v825
  %v1357 = vmul.f32 %v1352, %v832
  %v1358 = vmul.f32 %v1353, %v833
  %v1359 = vmul.f32 %v1354, %v834
  %v1360 = vmul.f32 %v1355, %v831
  %1366 = vrot.lane.b32.xlu0 %v1356, 113
  %v1367 = vpop.permute.xlu0 %1366
  %1368 = vrot.lane.b32.xlu0 %v1357, 113
  %v1369 = vpop.permute.xlu0 %1368
  %1370 = vrot.lane.b32.xlu0 %v1358, 113
  %v1371 = vpop.permute.xlu0 %1370
  %1372 = vrot.lane.b32.xlu0 %v1359, 113
  %v1373 = vpop.permute.xlu0 %1372
  %1374 = vrot.lane.b32.xlu0 %v1360, 113
  %v1375 = vpop.permute.xlu0 %1374
  %v1376 = vsel %vm579, %v1367, %v1369
  %v1377 = vsel %vm579, %v1369, %v1371
  %v1378 = vsel %vm579, %v1371, %v1373
  %v1379 = vsel %vm579, %v1373, %v1375
  %v1384 = vmul.f32 %v1340, %v1376
  %v1385 = vmul.f32 %v1342, %v1377
  %v1386 = vmul.f32 %v1344, %v1378
  %v1387 = vmul.f32 %v1346, %v1379
  %v1388 = vadd.f32 %v1331, %v1384
  %v1389 = vadd.f32 %v1332, %v1385
  %v1390 = vadd.f32 %v1333, %v1386
  %v1391 = vadd.f32 %v1334, %v1387
  %v1392 = vsub.f32 %v939, %v1014
  %v1393 = vsub.f32 %v940, %v1015
  %v1394 = vsub.f32 %v941, %v1016
  %v1395 = vsub.f32 %v942, %v1017
  %v1396 = vmul.f32 %v1392, 1.442695
  %v1397 = vpow.pop %v1396
  %v1398 = vmul.f32 %v1393, 1.442695
  %v1399 = vpow.pop %v1398
  %v1400 = vmul.f32 %v1394, 1.442695
  %v1401 = vpow.pop %v1400
  %v1402 = vmul.f32 %v1395, 1.442695
  %v1403 = vpow.pop %v1402
  %v1404 = vadd.f32 %v1347, %v1397
  %v1405 = vadd.f32 %v1348, %v1399
  %v1406 = vadd.f32 %v1349, %v1401
  %v1407 = vadd.f32 %v1350, %v1403
  %v1408 = vld [vmem:[#allocation2 + $0x1b8] sm:$0xff]
  %v1409 = vld [vmem:[#allocation2 + $0x1c0] sm:$0xff]
  %v1410 = vld [vmem:[#allocation2 + $0x1c8] sm:$0xff]
  %v1411 = vld [vmem:[#allocation2 + $0x1d0] sm:$0xff]
  %v1412 = vld [vmem:[#allocation2 + $0x1d8] sm:$0xff]
  %v1413 = vmul.f32 %v1408, %v896
  %v1414 = vmul.f32 %v1409, %v903
  %v1415 = vmul.f32 %v1410, %v904
  %v1416 = vmul.f32 %v1411, %v905
  %v1417 = vmul.f32 %v1412, %v902
  %1423 = vrot.lane.b32.xlu0 %v1413, 112
  %v1424 = vpop.permute.xlu0 %1423
  %1425 = vrot.lane.b32.xlu0 %v1414, 112
  %v1426 = vpop.permute.xlu0 %1425
  %1427 = vrot.lane.b32.xlu0 %v1415, 112
  %v1428 = vpop.permute.xlu0 %1427
  %1429 = vrot.lane.b32.xlu0 %v1416, 112
  %v1430 = vpop.permute.xlu0 %1429
  %1431 = vrot.lane.b32.xlu0 %v1417, 112
  %v1432 = vpop.permute.xlu0 %1431
  %v1433 = vsel %vm506, %v1424, %v1426
  %v1434 = vsel %vm506, %v1426, %v1428
  %v1435 = vsel %vm506, %v1428, %v1430
  %v1436 = vsel %vm506, %v1430, %v1432
  %v1441 = vmul.f32 %v1397, %v1433
  %v1442 = vmul.f32 %v1399, %v1434
  %v1443 = vmul.f32 %v1401, %v1435
  %v1444 = vmul.f32 %v1403, %v1436
  %v1445 = vadd.f32 %v1388, %v1441
  %v1446 = vadd.f32 %v1389, %v1442
  %v1447 = vadd.f32 %v1390, %v1443
  %v1448 = vadd.f32 %v1391, %v1444
  %v1449 = vsub.f32 %v1010, %v1014
  %v1450 = vsub.f32 %v1011, %v1015
  %v1451 = vsub.f32 %v1012, %v1016
  %v1452 = vsub.f32 %v1013, %v1017
  %v1453 = vmul.f32 %v1449, 1.442695
  %v1454 = vpow.pop %v1453
  %v1455 = vmul.f32 %v1450, 1.442695
  %v1456 = vpow.pop %v1455
  %v1457 = vmul.f32 %v1451, 1.442695
  %v1458 = vpow.pop %v1457
  %v1459 = vmul.f32 %v1452, 1.442695
  %v1460 = vpow.pop %v1459
  %v1461 = vadd.f32 %v1404, %v1454
  %v1462 = vadd.f32 %v1405, %v1456
  %v1463 = vadd.f32 %v1406, %v1458
  %v1464 = vadd.f32 %v1407, %v1460
  %v1465 = vld [vmem:[#allocation2 + $0x1e8] sm:$0xff]
  %v1466 = vld [vmem:[#allocation2 + $0x1f0] sm:$0xff]
  %v1467 = vld [vmem:[#allocation2 + $0x1f8] sm:$0xff]
  %v1468 = vld [vmem:[#allocation2 + $0x200] sm:$0xff]
  %v1469 = vld [vmem:[#allocation2 + $0x208] sm:$0xff]
  %v1470 = vmul.f32 %v1465, %v967
  %v1471 = vmul.f32 %v1466, %v974
  %v1472 = vmul.f32 %v1467, %v975
  %v1473 = vmul.f32 %v1468, %v976
  %v1474 = vmul.f32 %v1469, %v973
  %1480 = vrot.lane.b32.xlu0 %v1470, 111
  %v1481 = vpop.permute.xlu0 %1480
  %1482 = vrot.lane.b32.xlu0 %v1471, 111
  %v1483 = vpop.permute.xlu0 %1482
  %1484 = vrot.lane.b32.xlu0 %v1472, 111
  %v1485 = vpop.permute.xlu0 %1484
  %1486 = vrot.lane.b32.xlu0 %v1473, 111
  %v1487 = vpop.permute.xlu0 %1486
  %1488 = vrot.lane.b32.xlu0 %v1474, 111
  %v1489 = vpop.permute.xlu0 %1488
  %v1490 = vsel %vm437, %v1481, %v1483
  %v1491 = vsel %vm437, %v1483, %v1485
  %v1492 = vsel %vm437, %v1485, %v1487
  %v1493 = vsel %vm437, %v1487, %v1489
  %v1498 = vmul.f32 %v1454, %v1490
  %v1499 = vmul.f32 %v1456, %v1491
  %v1500 = vmul.f32 %v1458, %v1492
  %v1501 = vmul.f32 %v1460, %v1493
  %v1502 = vadd.f32 %v1445, %v1498
  %v1503 = vadd.f32 %v1446, %v1499
  %v1504 = vadd.f32 %v1447, %v1500
  %v1505 = vadd.f32 %v1448, %v1501
  %v1506 = vrcp.pop %v1461
  %v1507 = vmul.f32 %v1502, %v1506
  %v1508 = vrcp.pop %v1462
  %v1509 = vmul.f32 %v1503, %v1508
  %v1510 = vrcp.pop %v1463
  %v1511 = vmul.f32 %v1504, %v1510
  %v1512 = vrcp.pop %v1464
  %v1513 = vmul.f32 %v1505, %v1512
  %1514 = vst [vmem:[%s3] sm:$0xff] %v1507
  %1515 = vst [vmem:[%s3 + $0x8] sm:$0xff] %v1509
  %1516 = vst [vmem:[%s3 + $0x10] sm:$0xff] %v1511
  %1517 = vst [vmem:[%s3 + $0x18] sm:$0xff] %v1513
  // Predicated region
  $region14: #{attention_stem_forward.1} parent=0 // pred_check
    _
  $region15: #{attention_stem_forward.1} parent=0 // pred_check_branch
    %1519 = sbr.rel (0) target = $region17
  $region16: #{attention_stem_forward.1} parent=0 // pred_region
    _
  $region17: #{attention_stem_forward.1} parent=0 // pred_fallthru
    _
  // Predicated region
  $region18: #{attention_stem_forward.1} parent=0 // pred_check
    _
  $region19: #{attention_stem_forward.1} parent=0 // pred_check_branch
    %1521 = sbr.rel (0) target = $region21
  $region20: #{attention_stem_forward.1} parent=0 // pred_region
    _
  $region21: #{attention_stem_forward.1} parent=0 // pred_fallthru
    _

</llo_original>
